<compile_context>
chip_gen: v5e
topology: v5e:2x2
jax: 0.10.0
libtpu: 0.0.40
codegen_flags: <defaults>
</compile_context>

<pallas_src>
import functools

import jax
import jax.numpy as jnp
from jax import lax
from jax.experimental import pallas as pl
from jax.experimental.pallas import tpu as pltpu


def _ode_classifier_kernel(xT_ref, wdT_ref, bdT_ref, wcT_ref, bcT_ref,
                           outT_ref, *, t_start, t_end, granularity,
                           n_chains):
    """One batch tile, transposed layout: state x^T is [D, tb] (batch on lanes).

    Euler-integrates x' = tanh(Wd^T @ x^T + bd^T), applies the classifier
    Wc^T @ x^T + bc^T, then log_softmax over the class (sublane) axis.
    """
    dt = (t_end - t_start) / granularity

    D, tb = xT_ref.shape
    C = outT_ref.shape[0]
    assert tb % n_chains == 0
    cw = tb // n_chains

    # Weights arrive pre-transposed and pre-cast to bf16 (native MXU dtype).
    wd_bf = wdT_ref[...]                                        # [D, D] bf16
    wc_bf = wcT_ref[...]                                        # [C, D] bf16

    # Hoist bias broadcasts out of the loop (not CSE'd if left inside).
    bd_b = jnp.broadcast_to(bdT_ref[...].astype(jnp.float32), (D, cw))
    bc_b = jnp.broadcast_to(bcT_ref[...].astype(jnp.float32), (C, tb))

    xT = xT_ref[...].astype(jnp.float32)                        # [D, tb]
    chains = tuple(xT[:, c * cw:(c + 1) * cw] for c in range(n_chains))

    def euler_step(_, chains):
        new = []
        for xc in chains:  # independent chains -> MXU/EUP/VPU slot overlap
            f = jnp.tanh(
                jnp.dot(wd_bf, xc.astype(jnp.bfloat16),
                        preferred_element_type=jnp.float32) + bd_b)
            new.append(xc + dt * f)                             # f32 residual
        return tuple(new)

    # Fully unroll the (short, fixed) Euler loop for LLO scheduling visibility;
    # partial unroll only if the step count is large.
    unroll = True if granularity <= 64 else 8
    chains = lax.fori_loop(0, granularity, euler_step, chains, unroll=unroll)
    xT = chains[0] if n_chains == 1 else jnp.concatenate(chains, axis=1)

    # Classifier + numerically stable log_softmax over classes (sublane axis).
    logits = jnp.dot(wc_bf, xT.astype(jnp.bfloat16),
                     preferred_element_type=jnp.float32) + bc_b  # [C, tb]
    m = jnp.max(logits, axis=0, keepdims=True)
    shifted = logits - m
    lse = jnp.log(jnp.sum(jnp.exp(shifted), axis=0, keepdims=True))
    outT_ref[...] = (shifted - lse).astype(outT_ref.dtype)


def _default_batch_tile(B):
    """Largest lane-dense tile (multiple of 128) that still yields >= 2 grid
    steps; otherwise fall back to the whole batch (single-tile grid)."""
    for cand in (1024, 512, 256, 128):
        if B % cand == 0 and B // cand >= 2:
            return cand
    return B


def ode_classifier_forward(x, wd, bd, wc, bc, *, t_start=0.0, t_end=1.0,
                           granularity=50, batch_tile=None):
    """x: [B, D] f32; wd: [D, D]; bd: [1, D]; wc: [D, C]; bc: [1, C].

    Weights are stored [in, out] so the model computes x @ W + b (equivalent
    to PyTorch Linear's x @ W.T + b).  Returns log-probabilities [B, C].
    """
    B, D = x.shape
    C = wc.shape[1]
    tb = batch_tile if batch_tile is not None else _default_batch_tile(B)
    assert B % tb == 0, (B, tb)
    # Two interleaved batch chains only when each half is still lane-dense.
    n_chains = 2 if tb % 256 == 0 else 1

    # Transposed layout (batch on lanes); weights pre-transposed + bf16 cast.
    # These are one-time XLA ops outside the kernel.
    xT = x.T                                                  # [D, B] f32
    wdT = wd.T.astype(jnp.bfloat16)                           # [D, D]
    wcT = wc.T.astype(jnp.bfloat16)                           # [C, D]
    bdT = jnp.asarray(bd, jnp.float32).reshape(D, 1)          # [D, 1]
    bcT = jnp.asarray(bc, jnp.float32).reshape(C, 1)          # [C, 1]

    kernel = functools.partial(
        _ode_classifier_kernel, t_start=float(t_start), t_end=float(t_end),
        granularity=int(granularity), n_chains=n_chains)

    outT = pl.pallas_call(
        kernel,
        out_shape=jax.ShapeDtypeStruct((C, B), jnp.float32),
        grid_spec=pltpu.PrefetchScalarGridSpec(
            num_scalar_prefetch=0,
            grid=(B // tb,),
            in_specs=[
                pl.BlockSpec((D, tb), lambda i: (0, i)),   # x^T batch tile
                pl.BlockSpec((D, D), lambda i: (0, 0)),    # Wd^T (resident)
                pl.BlockSpec((D, 1), lambda i: (0, 0)),    # bd^T
                pl.BlockSpec((C, D), lambda i: (0, 0)),    # Wc^T
                pl.BlockSpec((C, 1), lambda i: (0, 0)),    # bc^T
            ],
            out_specs=pl.BlockSpec((C, tb), lambda i: (0, i)),
        ),
        compiler_params=pltpu.CompilerParams(
            dimension_semantics=("parallel",),
            # Footprint is KiB-scale today; explicit cap keeps headroom on
            # v7x's 64 MiB VMEM if D / batch_tile are scaled up later.
            vmem_limit_bytes=64 * 1024 * 1024),
    )(xT, wdT, bdT, wcT, bcT)

    return outT.T                                             # [B, C]


def reference_forward_f32(x, wd, bd, wc, bc, *, t_start=0.0, t_end=1.0,
                          granularity=50):
    """Pure-JAX f32 reference (mirrors the PyTorch module semantics)."""
    dt = (t_end - t_start) / granularity
    for _ in range(granularity):
        x = x + dt * jnp.tanh(x @ wd + bd)
    logits = x @ wc + bc
    return jax.nn.log_softmax(logits, axis=1)


def reference_forward_bf16(x, wd, bd, wc, bc, *, t_start=0.0, t_end=1.0,
                           granularity=50):
    """Pure-JAX reference mirroring the kernel's arithmetic: bf16 MXU
    operands, f32 accumulation, f32 state/residual/log_softmax."""
    dt = (t_end - t_start) / granularity
    wd_bf = wd.astype(jnp.bfloat16)
    wc_bf = wc.astype(jnp.bfloat16)
    x = x.astype(jnp.float32)
    for _ in range(granularity):
        pre = jnp.dot(x.astype(jnp.bfloat16), wd_bf,
                      preferred_element_type=jnp.float32) + bd
        x = x + dt * jnp.tanh(pre)
    logits = jnp.dot(x.astype(jnp.bfloat16), wc_bf,
                     preferred_element_type=jnp.float32) + bc
    return jax.nn.log_softmax(logits, axis=1)


if __name__ == "__main__":
    # Small shapes implied by the forward: x is [batch, n_dim].
    D, C = 32, 8          # n_dim, n_classes
    granularity = 50

    key = jax.random.PRNGKey(0)
    kx, kwd, kbd, kwc, kbc = jax.random.split(key, 5)

    # Deterministic synthetic parameters (no checkpoint load).
    wd = jax.random.normal(kwd, (D, D), dtype=jnp.float32) * (1.0 / jnp.sqrt(D))
    bd = jax.random.normal(kbd, (1, D), dtype=jnp.float32) * 0.1
    wc = jax.random.normal(kwc, (D, C), dtype=jnp.float32) * (1.0 / jnp.sqrt(D))
    bc = jax.random.normal(kbc, (1, C), dtype=jnp.float32) * 0.1

    # First config: the small canonical case (single tile, single chain).
    # Second config: exercises the multi-tile parallel grid and the two
    # interleaved batch chains (tb=256, grid=(2,)).
    for B, tile in ((8, None), (512, 256)):
        x = jax.random.normal(kx, (B, D), dtype=jnp.float32)

        out = ode_classifier_forward(
            x, wd, bd, wc, bc, t_start=0.0, t_end=1.0,
            granularity=granularity, batch_tile=tile)
        out = jax.block_until_ready(out)

        ref_f32 = jax.block_until_ready(reference_forward_f32(
            x, wd, bd, wc, bc, t_start=0.0, t_end=1.0,
            granularity=granularity))
        ref_bf16 = jax.block_until_ready(reference_forward_bf16(
            x, wd, bd, wc, bc, t_start=0.0, t_end=1.0,
            granularity=granularity))

        assert out.shape == (B, C)
        # Tight check vs. the bf16-mirrored reference (same arithmetic).
        assert jnp.allclose(out, ref_bf16, atol=2e-3, rtol=2e-3), (
            f"mismatch vs. bf16-mirrored reference (B={B}), "
            f"max abs err {float(jnp.max(jnp.abs(out - ref_bf16)))}")
        # Loose check vs. the exact f32 PyTorch-equivalent reference
        # (tolerance loosened for bf16 MXU operands over 50 Euler steps).
        assert jnp.allclose(out, ref_f32, atol=1e-1, rtol=1e-1), (
            f"mismatch vs. f32 reference (B={B}), "
            f"max abs err {float(jnp.max(jnp.abs(out - ref_f32)))}")
        # Rows are valid log-probabilities.
        assert jnp.allclose(jnp.sum(jnp.exp(out), axis=1), 1.0, atol=1e-4)

    print("KERNEL_OK")
</pallas_src>

<mosaic_0001>
module attributes {stable_mosaic.version = 11 : i64} {
  func.func @_ode_classifier_kernel(%arg0: i32, %arg1: memref<32x8xf32, #tpu.memory_space<vmem>>, %arg2: memref<32x32xbf16, #tpu.memory_space<vmem>>, %arg3: memref<32x1xf32, #tpu.memory_space<vmem>>, %arg4: memref<8x32xbf16, #tpu.memory_space<vmem>>, %arg5: memref<8x1xf32, #tpu.memory_space<vmem>>, %arg6: memref<8x8xf32, #tpu.memory_space<vmem>>) attributes {dimension_semantics = [#tpu.dimension_semantics<parallel>], iteration_bounds = array<i64: 1>, scalar_prefetch = 0 : i64, scratch_operands = 0 : i64, tpu.core_type = #tpu.core_type<tc>, window_params = [{transform_indices = @transform_0, window_bounds = array<i64: 32, 8>}, {pipeline_mode = #tpu.pipeline_mode<synchronous>, transform_indices = @transform_1, window_bounds = array<i64: 32, 32>}, {pipeline_mode = #tpu.pipeline_mode<synchronous>, transform_indices = @transform_2, window_bounds = array<i64: 32, 1>}, {pipeline_mode = #tpu.pipeline_mode<synchronous>, transform_indices = @transform_3, window_bounds = array<i64: 8, 32>}, {pipeline_mode = #tpu.pipeline_mode<synchronous>, transform_indices = @transform_4, window_bounds = array<i64: 8, 1>}, {transform_indices = @transform_5, window_bounds = array<i64: 8, 8>}]} {
    %c0 = arith.constant 0 : index
    %c0_0 = arith.constant 0 : index
    %0 = vector.load %arg2[%c0, %c0_0] : memref<32x32xbf16, #tpu.memory_space<vmem>>, vector<32x32xbf16>
    %c0_1 = arith.constant 0 : index
    %c0_2 = arith.constant 0 : index
    %1 = vector.load %arg4[%c0_1, %c0_2] : memref<8x32xbf16, #tpu.memory_space<vmem>>, vector<8x32xbf16>
    %c0_3 = arith.constant 0 : index
    %c0_4 = arith.constant 0 : index
    %2 = vector.load %arg3[%c0_3, %c0_4] : memref<32x1xf32, #tpu.memory_space<vmem>>, vector<32x1xf32>
    %3 = vector.shape_cast %2 : vector<32x1xf32> to vector<32x1xf32>
    %4 = vector.broadcast %3 : vector<32x1xf32> to vector<32x8xf32>
    %c0_5 = arith.constant 0 : index
    %c0_6 = arith.constant 0 : index
    %5 = vector.load %arg5[%c0_5, %c0_6] : memref<8x1xf32, #tpu.memory_space<vmem>>, vector<8x1xf32>
    %6 = vector.shape_cast %5 : vector<8x1xf32> to vector<8x1xf32>
    %7 = vector.broadcast %6 : vector<8x1xf32> to vector<8x8xf32>
    %c0_7 = arith.constant 0 : index
    %c0_8 = arith.constant 0 : index
    %8 = vector.load %arg1[%c0_7, %c0_8] : memref<32x8xf32, #tpu.memory_space<vmem>>, vector<32x8xf32>
    %c0_i32 = arith.constant 0 : i32
    %9 = arith.truncf %8 : vector<32x8xf32> to vector<32x8xbf16>
    %cst = arith.constant dense<0.000000e+00> : vector<32x8xf32>
    %10 = tpu.matmul %0, %9, %cst {dimension_numbers = #tpu.dot_dimension_numbers<[1], [0], [0], [1], [0, 0, 1, 1], [], []>} : vector<32x32xbf16>, vector<32x8xbf16>, vector<32x8xf32> -> vector<32x8xf32>
    %11 = arith.addf %10, %4 : vector<32x8xf32>
    %12 = math.tanh %11 : vector<32x8xf32>
    %cst_9 = arith.constant 2.000000e-02 : f32
    %13 = vector.broadcast %cst_9 : f32 to vector<32x8xf32>
    %14 = arith.mulf %13, %12 : vector<32x8xf32>
    %15 = arith.addf %8, %14 : vector<32x8xf32>
    %c1_i32 = arith.constant 1 : i32
    %16 = arith.truncf %15 : vector<32x8xf32> to vector<32x8xbf16>
    %cst_10 = arith.constant dense<0.000000e+00> : vector<32x8xf32>
    %17 = tpu.matmul %0, %16, %cst_10 {dimension_numbers = #tpu.dot_dimension_numbers<[1], [0], [0], [1], [0, 0, 1, 1], [], []>} : vector<32x32xbf16>, vector<32x8xbf16>, vector<32x8xf32> -> vector<32x8xf32>
    %18 = arith.addf %17, %4 : vector<32x8xf32>
    %19 = math.tanh %18 : vector<32x8xf32>
    %cst_11 = arith.constant 2.000000e-02 : f32
    %20 = vector.broadcast %cst_11 : f32 to vector<32x8xf32>
    %21 = arith.mulf %20, %19 : vector<32x8xf32>
    %22 = arith.addf %15, %21 : vector<32x8xf32>
    %c2_i32 = arith.constant 2 : i32
    %23 = arith.truncf %22 : vector<32x8xf32> to vector<32x8xbf16>
    %cst_12 = arith.constant dense<0.000000e+00> : vector<32x8xf32>
    %24 = tpu.matmul %0, %23, %cst_12 {dimension_numbers = #tpu.dot_dimension_numbers<[1], [0], [0], [1], [0, 0, 1, 1], [], []>} : vector<32x32xbf16>, vector<32x8xbf16>, vector<32x8xf32> -> vector<32x8xf32>
    %25 = arith.addf %24, %4 : vector<32x8xf32>
    %26 = math.tanh %25 : vector<32x8xf32>
    %cst_13 = arith.constant 2.000000e-02 : f32
    %27 = vector.broadcast %cst_13 : f32 to vector<32x8xf32>
    %28 = arith.mulf %27, %26 : vector<32x8xf32>
    %29 = arith.addf %22, %28 : vector<32x8xf32>
    %c3_i32 = arith.constant 3 : i32
    %30 = arith.truncf %29 : vector<32x8xf32> to vector<32x8xbf16>
    %cst_14 = arith.constant dense<0.000000e+00> : vector<32x8xf32>
    %31 = tpu.matmul %0, %30, %cst_14 {dimension_numbers = #tpu.dot_dimension_numbers<[1], [0], [0], [1], [0, 0, 1, 1], [], []>} : vector<32x32xbf16>, vector<32x8xbf16>, vector<32x8xf32> -> vector<32x8xf32>
    %32 = arith.addf %31, %4 : vector<32x8xf32>
    %33 = math.tanh %32 : vector<32x8xf32>
    %cst_15 = arith.constant 2.000000e-02 : f32
    %34 = vector.broadcast %cst_15 : f32 to vector<32x8xf32>
    %35 = arith.mulf %34, %33 : vector<32x8xf32>
    %36 = arith.addf %29, %35 : vector<32x8xf32>
    %c4_i32 = arith.constant 4 : i32
    %37 = arith.truncf %36 : vector<32x8xf32> to vector<32x8xbf16>
    %cst_16 = arith.constant dense<0.000000e+00> : vector<32x8xf32>
    %38 = tpu.matmul %0, %37, %cst_16 {dimension_numbers = #tpu.dot_dimension_numbers<[1], [0], [0], [1], [0, 0, 1, 1], [], []>} : vector<32x32xbf16>, vector<32x8xbf16>, vector<32x8xf32> -> vector<32x8xf32>
    %39 = arith.addf %38, %4 : vector<32x8xf32>
    %40 = math.tanh %39 : vector<32x8xf32>
    %cst_17 = arith.constant 2.000000e-02 : f32
    %41 = vector.broadcast %cst_17 : f32 to vector<32x8xf32>
    %42 = arith.mulf %41, %40 : vector<32x8xf32>
    %43 = arith.addf %36, %42 : vector<32x8xf32>
    %c5_i32 = arith.constant 5 : i32
    %44 = arith.truncf %43 : vector<32x8xf32> to vector<32x8xbf16>
    %cst_18 = arith.constant dense<0.000000e+00> : vector<32x8xf32>
    %45 = tpu.matmul %0, %44, %cst_18 {dimension_numbers = #tpu.dot_dimension_numbers<[1], [0], [0], [1], [0, 0, 1, 1], [], []>} : vector<32x32xbf16>, vector<32x8xbf16>, vector<32x8xf32> -> vector<32x8xf32>
    %46 = arith.addf %45, %4 : vector<32x8xf32>
    %47 = math.tanh %46 : vector<32x8xf32>
    %cst_19 = arith.constant 2.000000e-02 : f32
    %48 = vector.broadcast %cst_19 : f32 to vector<32x8xf32>
    %49 = arith.mulf %48, %47 : vector<32x8xf32>
    %50 = arith.addf %43, %49 : vector<32x8xf32>
    %c6_i32 = arith.constant 6 : i32
    %51 = arith.truncf %50 : vector<32x8xf32> to vector<32x8xbf16>
    %cst_20 = arith.constant dense<0.000000e+00> : vector<32x8xf32>
    %52 = tpu.matmul %0, %51, %cst_20 {dimension_numbers = #tpu.dot_dimension_numbers<[1], [0], [0], [1], [0, 0, 1, 1], [], []>} : vector<32x32xbf16>, vector<32x8xbf16>, vector<32x8xf32> -> vector<32x8xf32>
    %53 = arith.addf %52, %4 : vector<32x8xf32>
    %54 = math.tanh %53 : vector<32x8xf32>
    %cst_21 = arith.constant 2.000000e-02 : f32
    %55 = vector.broadcast %cst_21 : f32 to vector<32x8xf32>
    %56 = arith.mulf %55, %54 : vector<32x8xf32>
    %57 = arith.addf %50, %56 : vector<32x8xf32>
    %c7_i32 = arith.constant 7 : i32
    %58 = arith.truncf %57 : vector<32x8xf32> to vector<32x8xbf16>
    %cst_22 = arith.constant dense<0.000000e+00> : vector<32x8xf32>
    %59 = tpu.matmul %0, %58, %cst_22 {dimension_numbers = #tpu.dot_dimension_numbers<[1], [0], [0], [1], [0, 0, 1, 1], [], []>} : vector<32x32xbf16>, vector<32x8xbf16>, vector<32x8xf32> -> vector<32x8xf32>
    %60 = arith.addf %59, %4 : vector<32x8xf32>
    %61 = math.tanh %60 : vector<32x8xf32>
    %cst_23 = arith.constant 2.000000e-02 : f32
    %62 = vector.broadcast %cst_23 : f32 to vector<32x8xf32>
    %63 = arith.mulf %62, %61 : vector<32x8xf32>
    %64 = arith.addf %57, %63 : vector<32x8xf32>
    %c8_i32 = arith.constant 8 : i32
    %65 = arith.truncf %64 : vector<32x8xf32> to vector<32x8xbf16>
    %cst_24 = arith.constant dense<0.000000e+00> : vector<32x8xf32>
    %66 = tpu.matmul %0, %65, %cst_24 {dimension_numbers = #tpu.dot_dimension_numbers<[1], [0], [0], [1], [0, 0, 1, 1], [], []>} : vector<32x32xbf16>, vector<32x8xbf16>, vector<32x8xf32> -> vector<32x8xf32>
    %67 = arith.addf %66, %4 : vector<32x8xf32>
    %68 = math.tanh %67 : vector<32x8xf32>
    %cst_25 = arith.constant 2.000000e-02 : f32
    %69 = vector.broadcast %cst_25 : f32 to vector<32x8xf32>
    %70 = arith.mulf %69, %68 : vector<32x8xf32>
    %71 = arith.addf %64, %70 : vector<32x8xf32>
    %c9_i32 = arith.constant 9 : i32
    %72 = arith.truncf %71 : vector<32x8xf32> to vector<32x8xbf16>
    %cst_26 = arith.constant dense<0.000000e+00> : vector<32x8xf32>
    %73 = tpu.matmul %0, %72, %cst_26 {dimension_numbers = #tpu.dot_dimension_numbers<[1], [0], [0], [1], [0, 0, 1, 1], [], []>} : vector<32x32xbf16>, vector<32x8xbf16>, vector<32x8xf32> -> vector<32x8xf32>
    %74 = arith.addf %73, %4 : vector<32x8xf32>
    %75 = math.tanh %74 : vector<32x8xf32>
    %cst_27 = arith.constant 2.000000e-02 : f32
    %76 = vector.broadcast %cst_27 : f32 to vector<32x8xf32>
    %77 = arith.mulf %76, %75 : vector<32x8xf32>
    %78 = arith.addf %71, %77 : vector<32x8xf32>
    %c10_i32 = arith.constant 10 : i32
    %79 = arith.truncf %78 : vector<32x8xf32> to vector<32x8xbf16>
    %cst_28 = arith.constant dense<0.000000e+00> : vector<32x8xf32>
    %80 = tpu.matmul %0, %79, %cst_28 {dimension_numbers = #tpu.dot_dimension_numbers<[1], [0], [0], [1], [0, 0, 1, 1], [], []>} : vector<32x32xbf16>, vector<32x8xbf16>, vector<32x8xf32> -> vector<32x8xf32>
    %81 = arith.addf %80, %4 : vector<32x8xf32>
    %82 = math.tanh %81 : vector<32x8xf32>
    %cst_29 = arith.constant 2.000000e-02 : f32
    %83 = vector.broadcast %cst_29 : f32 to vector<32x8xf32>
    %84 = arith.mulf %83, %82 : vector<32x8xf32>
    %85 = arith.addf %78, %84 : vector<32x8xf32>
    %c11_i32 = arith.constant 11 : i32
    %86 = arith.truncf %85 : vector<32x8xf32> to vector<32x8xbf16>
    %cst_30 = arith.constant dense<0.000000e+00> : vector<32x8xf32>
    %87 = tpu.matmul %0, %86, %cst_30 {dimension_numbers = #tpu.dot_dimension_numbers<[1], [0], [0], [1], [0, 0, 1, 1], [], []>} : vector<32x32xbf16>, vector<32x8xbf16>, vector<32x8xf32> -> vector<32x8xf32>
    %88 = arith.addf %87, %4 : vector<32x8xf32>
    %89 = math.tanh %88 : vector<32x8xf32>
    %cst_31 = arith.constant 2.000000e-02 : f32
    %90 = vector.broadcast %cst_31 : f32 to vector<32x8xf32>
    %91 = arith.mulf %90, %89 : vector<32x8xf32>
    %92 = arith.addf %85, %91 : vector<32x8xf32>
    %c12_i32 = arith.constant 12 : i32
    %93 = arith.truncf %92 : vector<32x8xf32> to vector<32x8xbf16>
    %cst_32 = arith.constant dense<0.000000e+00> : vector<32x8xf32>
    %94 = tpu.matmul %0, %93, %cst_32 {dimension_numbers = #tpu.dot_dimension_numbers<[1], [0], [0], [1], [0, 0, 1, 1], [], []>} : vector<32x32xbf16>, vector<32x8xbf16>, vector<32x8xf32> -> vector<32x8xf32>
    %95 = arith.addf %94, %4 : vector<32x8xf32>
    %96 = math.tanh %95 : vector<32x8xf32>
    %cst_33 = arith.constant 2.000000e-02 : f32
    %97 = vector.broadcast %cst_33 : f32 to vector<32x8xf32>
    %98 = arith.mulf %97, %96 : vector<32x8xf32>
    %99 = arith.addf %92, %98 : vector<32x8xf32>
    %c13_i32 = arith.constant 13 : i32
    %100 = arith.truncf %99 : vector<32x8xf32> to vector<32x8xbf16>
    %cst_34 = arith.constant dense<0.000000e+00> : vector<32x8xf32>
    %101 = tpu.matmul %0, %100, %cst_34 {dimension_numbers = #tpu.dot_dimension_numbers<[1], [0], [0], [1], [0, 0, 1, 1], [], []>} : vector<32x32xbf16>, vector<32x8xbf16>, vector<32x8xf32> -> vector<32x8xf32>
    %102 = arith.addf %101, %4 : vector<32x8xf32>
    %103 = math.tanh %102 : vector<32x8xf32>
    %cst_35 = arith.constant 2.000000e-02 : f32
    %104 = vector.broadcast %cst_35 : f32 to vector<32x8xf32>
    %105 = arith.mulf %104, %103 : vector<32x8xf32>
    %106 = arith.addf %99, %105 : vector<32x8xf32>
    %c14_i32 = arith.constant 14 : i32
    %107 = arith.truncf %106 : vector<32x8xf32> to vector<32x8xbf16>
    %cst_36 = arith.constant dense<0.000000e+00> : vector<32x8xf32>
    %108 = tpu.matmul %0, %107, %cst_36 {dimension_numbers = #tpu.dot_dimension_numbers<[1], [0], [0], [1], [0, 0, 1, 1], [], []>} : vector<32x32xbf16>, vector<32x8xbf16>, vector<32x8xf32> -> vector<32x8xf32>
    %109 = arith.addf %108, %4 : vector<32x8xf32>
    %110 = math.tanh %109 : vector<32x8xf32>
    %cst_37 = arith.constant 2.000000e-02 : f32
    %111 = vector.broadcast %cst_37 : f32 to vector<32x8xf32>
    %112 = arith.mulf %111, %110 : vector<32x8xf32>
    %113 = arith.addf %106, %112 : vector<32x8xf32>
    %c15_i32 = arith.constant 15 : i32
    %114 = arith.truncf %113 : vector<32x8xf32> to vector<32x8xbf16>
    %cst_38 = arith.constant dense<0.000000e+00> : vector<32x8xf32>
    %115 = tpu.matmul %0, %114, %cst_38 {dimension_numbers = #tpu.dot_dimension_numbers<[1], [0], [0], [1], [0, 0, 1, 1], [], []>} : vector<32x32xbf16>, vector<32x8xbf16>, vector<32x8xf32> -> vector<32x8xf32>
    %116 = arith.addf %115, %4 : vector<32x8xf32>
    %117 = math.tanh %116 : vector<32x8xf32>
    %cst_39 = arith.constant 2.000000e-02 : f32
    %118 = vector.broadcast %cst_39 : f32 to vector<32x8xf32>
    %119 = arith.mulf %118, %117 : vector<32x8xf32>
    %120 = arith.addf %113, %119 : vector<32x8xf32>
    %c16_i32 = arith.constant 16 : i32
    %121 = arith.truncf %120 : vector<32x8xf32> to vector<32x8xbf16>
    %cst_40 = arith.constant dense<0.000000e+00> : vector<32x8xf32>
    %122 = tpu.matmul %0, %121, %cst_40 {dimension_numbers = #tpu.dot_dimension_numbers<[1], [0], [0], [1], [0, 0, 1, 1], [], []>} : vector<32x32xbf16>, vector<32x8xbf16>, vector<32x8xf32> -> vector<32x8xf32>
    %123 = arith.addf %122, %4 : vector<32x8xf32>
    %124 = math.tanh %123 : vector<32x8xf32>
    %cst_41 = arith.constant 2.000000e-02 : f32
    %125 = vector.broadcast %cst_41 : f32 to vector<32x8xf32>
    %126 = arith.mulf %125, %124 : vector<32x8xf32>
    %127 = arith.addf %120, %126 : vector<32x8xf32>
    %c17_i32 = arith.constant 17 : i32
    %128 = arith.truncf %127 : vector<32x8xf32> to vector<32x8xbf16>
    %cst_42 = arith.constant dense<0.000000e+00> : vector<32x8xf32>
    %129 = tpu.matmul %0, %128, %cst_42 {dimension_numbers = #tpu.dot_dimension_numbers<[1], [0], [0], [1], [0, 0, 1, 1], [], []>} : vector<32x32xbf16>, vector<32x8xbf16>, vector<32x8xf32> -> vector<32x8xf32>
    %130 = arith.addf %129, %4 : vector<32x8xf32>
    %131 = math.tanh %130 : vector<32x8xf32>
    %cst_43 = arith.constant 2.000000e-02 : f32
    %132 = vector.broadcast %cst_43 : f32 to vector<32x8xf32>
    %133 = arith.mulf %132, %131 : vector<32x8xf32>
    %134 = arith.addf %127, %133 : vector<32x8xf32>
    %c18_i32 = arith.constant 18 : i32
    %135 = arith.truncf %134 : vector<32x8xf32> to vector<32x8xbf16>
    %cst_44 = arith.constant dense<0.000000e+00> : vector<32x8xf32>
    %136 = tpu.matmul %0, %135, %cst_44 {dimension_numbers = #tpu.dot_dimension_numbers<[1], [0], [0], [1], [0, 0, 1, 1], [], []>} : vector<32x32xbf16>, vector<32x8xbf16>, vector<32x8xf32> -> vector<32x8xf32>
    %137 = arith.addf %136, %4 : vector<32x8xf32>
    %138 = math.tanh %137 : vector<32x8xf32>
    %cst_45 = arith.constant 2.000000e-02 : f32
    %139 = vector.broadcast %cst_45 : f32 to vector<32x8xf32>
    %140 = arith.mulf %139, %138 : vector<32x8xf32>
    %141 = arith.addf %134, %140 : vector<32x8xf32>
    %c19_i32 = arith.constant 19 : i32
    %142 = arith.truncf %141 : vector<32x8xf32> to vector<32x8xbf16>
    %cst_46 = arith.constant dense<0.000000e+00> : vector<32x8xf32>
    %143 = tpu.matmul %0, %142, %cst_46 {dimension_numbers = #tpu.dot_dimension_numbers<[1], [0], [0], [1], [0, 0, 1, 1], [], []>} : vector<32x32xbf16>, vector<32x8xbf16>, vector<32x8xf32> -> vector<32x8xf32>
    %144 = arith.addf %143, %4 : vector<32x8xf32>
    %145 = math.tanh %144 : vector<32x8xf32>
    %cst_47 = arith.constant 2.000000e-02 : f32
    %146 = vector.broadcast %cst_47 : f32 to vector<32x8xf32>
    %147 = arith.mulf %146, %145 : vector<32x8xf32>
    %148 = arith.addf %141, %147 : vector<32x8xf32>
    %c20_i32 = arith.constant 20 : i32
    %149 = arith.truncf %148 : vector<32x8xf32> to vector<32x8xbf16>
    %cst_48 = arith.constant dense<0.000000e+00> : vector<32x8xf32>
    %150 = tpu.matmul %0, %149, %cst_48 {dimension_numbers = #tpu.dot_dimension_numbers<[1], [0], [0], [1], [0, 0, 1, 1], [], []>} : vector<32x32xbf16>, vector<32x8xbf16>, vector<32x8xf32> -> vector<32x8xf32>
    %151 = arith.addf %150, %4 : vector<32x8xf32>
    %152 = math.tanh %151 : vector<32x8xf32>
    %cst_49 = arith.constant 2.000000e-02 : f32
    %153 = vector.broadcast %cst_49 : f32 to vector<32x8xf32>
    %154 = arith.mulf %153, %152 : vector<32x8xf32>
    %155 = arith.addf %148, %154 : vector<32x8xf32>
    %c21_i32 = arith.constant 21 : i32
    %156 = arith.truncf %155 : vector<32x8xf32> to vector<32x8xbf16>
    %cst_50 = arith.constant dense<0.000000e+00> : vector<32x8xf32>
    %157 = tpu.matmul %0, %156, %cst_50 {dimension_numbers = #tpu.dot_dimension_numbers<[1], [0], [0], [1], [0, 0, 1, 1], [], []>} : vector<32x32xbf16>, vector<32x8xbf16>, vector<32x8xf32> -> vector<32x8xf32>
    %158 = arith.addf %157, %4 : vector<32x8xf32>
    %159 = math.tanh %158 : vector<32x8xf32>
    %cst_51 = arith.constant 2.000000e-02 : f32
    %160 = vector.broadcast %cst_51 : f32 to vector<32x8xf32>
    %161 = arith.mulf %160, %159 : vector<32x8xf32>
    %162 = arith.addf %155, %161 : vector<32x8xf32>
    %c22_i32 = arith.constant 22 : i32
    %163 = arith.truncf %162 : vector<32x8xf32> to vector<32x8xbf16>
    %cst_52 = arith.constant dense<0.000000e+00> : vector<32x8xf32>
    %164 = tpu.matmul %0, %163, %cst_52 {dimension_numbers = #tpu.dot_dimension_numbers<[1], [0], [0], [1], [0, 0, 1, 1], [], []>} : vector<32x32xbf16>, vector<32x8xbf16>, vector<32x8xf32> -> vector<32x8xf32>
    %165 = arith.addf %164, %4 : vector<32x8xf32>
    %166 = math.tanh %165 : vector<32x8xf32>
    %cst_53 = arith.constant 2.000000e-02 : f32
    %167 = vector.broadcast %cst_53 : f32 to vector<32x8xf32>
    %168 = arith.mulf %167, %166 : vector<32x8xf32>
    %169 = arith.addf %162, %168 : vector<32x8xf32>
    %c23_i32 = arith.constant 23 : i32
    %170 = arith.truncf %169 : vector<32x8xf32> to vector<32x8xbf16>
    %cst_54 = arith.constant dense<0.000000e+00> : vector<32x8xf32>
    %171 = tpu.matmul %0, %170, %cst_54 {dimension_numbers = #tpu.dot_dimension_numbers<[1], [0], [0], [1], [0, 0, 1, 1], [], []>} : vector<32x32xbf16>, vector<32x8xbf16>, vector<32x8xf32> -> vector<32x8xf32>
    %172 = arith.addf %171, %4 : vector<32x8xf32>
    %173 = math.tanh %172 : vector<32x8xf32>
    %cst_55 = arith.constant 2.000000e-02 : f32
    %174 = vector.broadcast %cst_55 : f32 to vector<32x8xf32>
    %175 = arith.mulf %174, %173 : vector<32x8xf32>
    %176 = arith.addf %169, %175 : vector<32x8xf32>
    %c24_i32 = arith.constant 24 : i32
    %177 = arith.truncf %176 : vector<32x8xf32> to vector<32x8xbf16>
    %cst_56 = arith.constant dense<0.000000e+00> : vector<32x8xf32>
    %178 = tpu.matmul %0, %177, %cst_56 {dimension_numbers = #tpu.dot_dimension_numbers<[1], [0], [0], [1], [0, 0, 1, 1], [], []>} : vector<32x32xbf16>, vector<32x8xbf16>, vector<32x8xf32> -> vector<32x8xf32>
    %179 = arith.addf %178, %4 : vector<32x8xf32>
    %180 = math.tanh %179 : vector<32x8xf32>
    %cst_57 = arith.constant 2.000000e-02 : f32
    %181 = vector.broadcast %cst_57 : f32 to vector<32x8xf32>
    %182 = arith.mulf %181, %180 : vector<32x8xf32>
    %183 = arith.addf %176, %182 : vector<32x8xf32>
    %c25_i32 = arith.constant 25 : i32
    %184 = arith.truncf %183 : vector<32x8xf32> to vector<32x8xbf16>
    %cst_58 = arith.constant dense<0.000000e+00> : vector<32x8xf32>
    %185 = tpu.matmul %0, %184, %cst_58 {dimension_numbers = #tpu.dot_dimension_numbers<[1], [0], [0], [1], [0, 0, 1, 1], [], []>} : vector<32x32xbf16>, vector<32x8xbf16>, vector<32x8xf32> -> vector<32x8xf32>
    %186 = arith.addf %185, %4 : vector<32x8xf32>
    %187 = math.tanh %186 : vector<32x8xf32>
    %cst_59 = arith.constant 2.000000e-02 : f32
    %188 = vector.broadcast %cst_59 : f32 to vector<32x8xf32>
    %189 = arith.mulf %188, %187 : vector<32x8xf32>
    %190 = arith.addf %183, %189 : vector<32x8xf32>
    %c26_i32 = arith.constant 26 : i32
    %191 = arith.truncf %190 : vector<32x8xf32> to vector<32x8xbf16>
    %cst_60 = arith.constant dense<0.000000e+00> : vector<32x8xf32>
    %192 = tpu.matmul %0, %191, %cst_60 {dimension_numbers = #tpu.dot_dimension_numbers<[1], [0], [0], [1], [0, 0, 1, 1], [], []>} : vector<32x32xbf16>, vector<32x8xbf16>, vector<32x8xf32> -> vector<32x8xf32>
    %193 = arith.addf %192, %4 : vector<32x8xf32>
    %194 = math.tanh %193 : vector<32x8xf32>
    %cst_61 = arith.constant 2.000000e-02 : f32
    %195 = vector.broadcast %cst_61 : f32 to vector<32x8xf32>
    %196 = arith.mulf %195, %194 : vector<32x8xf32>
    %197 = arith.addf %190, %196 : vector<32x8xf32>
    %c27_i32 = arith.constant 27 : i32
    %198 = arith.truncf %197 : vector<32x8xf32> to vector<32x8xbf16>
    %cst_62 = arith.constant dense<0.000000e+00> : vector<32x8xf32>
    %199 = tpu.matmul %0, %198, %cst_62 {dimension_numbers = #tpu.dot_dimension_numbers<[1], [0], [0], [1], [0, 0, 1, 1], [], []>} : vector<32x32xbf16>, vector<32x8xbf16>, vector<32x8xf32> -> vector<32x8xf32>
    %200 = arith.addf %199, %4 : vector<32x8xf32>
    %201 = math.tanh %200 : vector<32x8xf32>
    %cst_63 = arith.constant 2.000000e-02 : f32
    %202 = vector.broadcast %cst_63 : f32 to vector<32x8xf32>
    %203 = arith.mulf %202, %201 : vector<32x8xf32>
    %204 = arith.addf %197, %203 : vector<32x8xf32>
    %c28_i32 = arith.constant 28 : i32
    %205 = arith.truncf %204 : vector<32x8xf32> to vector<32x8xbf16>
    %cst_64 = arith.constant dense<0.000000e+00> : vector<32x8xf32>
    %206 = tpu.matmul %0, %205, %cst_64 {dimension_numbers = #tpu.dot_dimension_numbers<[1], [0], [0], [1], [0, 0, 1, 1], [], []>} : vector<32x32xbf16>, vector<32x8xbf16>, vector<32x8xf32> -> vector<32x8xf32>
    %207 = arith.addf %206, %4 : vector<32x8xf32>
    %208 = math.tanh %207 : vector<32x8xf32>
    %cst_65 = arith.constant 2.000000e-02 : f32
    %209 = vector.broadcast %cst_65 : f32 to vector<32x8xf32>
    %210 = arith.mulf %209, %208 : vector<32x8xf32>
    %211 = arith.addf %204, %210 : vector<32x8xf32>
    %c29_i32 = arith.constant 29 : i32
    %212 = arith.truncf %211 : vector<32x8xf32> to vector<32x8xbf16>
    %cst_66 = arith.constant dense<0.000000e+00> : vector<32x8xf32>
    %213 = tpu.matmul %0, %212, %cst_66 {dimension_numbers = #tpu.dot_dimension_numbers<[1], [0], [0], [1], [0, 0, 1, 1], [], []>} : vector<32x32xbf16>, vector<32x8xbf16>, vector<32x8xf32> -> vector<32x8xf32>
    %214 = arith.addf %213, %4 : vector<32x8xf32>
    %215 = math.tanh %214 : vector<32x8xf32>
    %cst_67 = arith.constant 2.000000e-02 : f32
    %216 = vector.broadcast %cst_67 : f32 to vector<32x8xf32>
    %217 = arith.mulf %216, %215 : vector<32x8xf32>
    %218 = arith.addf %211, %217 : vector<32x8xf32>
    %c30_i32 = arith.constant 30 : i32
    %219 = arith.truncf %218 : vector<32x8xf32> to vector<32x8xbf16>
    %cst_68 = arith.constant dense<0.000000e+00> : vector<32x8xf32>
    %220 = tpu.matmul %0, %219, %cst_68 {dimension_numbers = #tpu.dot_dimension_numbers<[1], [0], [0], [1], [0, 0, 1, 1], [], []>} : vector<32x32xbf16>, vector<32x8xbf16>, vector<32x8xf32> -> vector<32x8xf32>
    %221 = arith.addf %220, %4 : vector<32x8xf32>
    %222 = math.tanh %221 : vector<32x8xf32>
    %cst_69 = arith.constant 2.000000e-02 : f32
    %223 = vector.broadcast %cst_69 : f32 to vector<32x8xf32>
    %224 = arith.mulf %223, %222 : vector<32x8xf32>
    %225 = arith.addf %218, %224 : vector<32x8xf32>
    %c31_i32 = arith.constant 31 : i32
    %226 = arith.truncf %225 : vector<32x8xf32> to vector<32x8xbf16>
    %cst_70 = arith.constant dense<0.000000e+00> : vector<32x8xf32>
    %227 = tpu.matmul %0, %226, %cst_70 {dimension_numbers = #tpu.dot_dimension_numbers<[1], [0], [0], [1], [0, 0, 1, 1], [], []>} : vector<32x32xbf16>, vector<32x8xbf16>, vector<32x8xf32> -> vector<32x8xf32>
    %228 = arith.addf %227, %4 : vector<32x8xf32>
    %229 = math.tanh %228 : vector<32x8xf32>
    %cst_71 = arith.constant 2.000000e-02 : f32
    %230 = vector.broadcast %cst_71 : f32 to vector<32x8xf32>
    %231 = arith.mulf %230, %229 : vector<32x8xf32>
    %232 = arith.addf %225, %231 : vector<32x8xf32>
    %c32_i32 = arith.constant 32 : i32
    %233 = arith.truncf %232 : vector<32x8xf32> to vector<32x8xbf16>
    %cst_72 = arith.constant dense<0.000000e+00> : vector<32x8xf32>
    %234 = tpu.matmul %0, %233, %cst_72 {dimension_numbers = #tpu.dot_dimension_numbers<[1], [0], [0], [1], [0, 0, 1, 1], [], []>} : vector<32x32xbf16>, vector<32x8xbf16>, vector<32x8xf32> -> vector<32x8xf32>
    %235 = arith.addf %234, %4 : vector<32x8xf32>
    %236 = math.tanh %235 : vector<32x8xf32>
    %cst_73 = arith.constant 2.000000e-02 : f32
    %237 = vector.broadcast %cst_73 : f32 to vector<32x8xf32>
    %238 = arith.mulf %237, %236 : vector<32x8xf32>
    %239 = arith.addf %232, %238 : vector<32x8xf32>
    %c33_i32 = arith.constant 33 : i32
    %240 = arith.truncf %239 : vector<32x8xf32> to vector<32x8xbf16>
    %cst_74 = arith.constant dense<0.000000e+00> : vector<32x8xf32>
    %241 = tpu.matmul %0, %240, %cst_74 {dimension_numbers = #tpu.dot_dimension_numbers<[1], [0], [0], [1], [0, 0, 1, 1], [], []>} : vector<32x32xbf16>, vector<32x8xbf16>, vector<32x8xf32> -> vector<32x8xf32>
    %242 = arith.addf %241, %4 : vector<32x8xf32>
    %243 = math.tanh %242 : vector<32x8xf32>
    %cst_75 = arith.constant 2.000000e-02 : f32
    %244 = vector.broadcast %cst_75 : f32 to vector<32x8xf32>
    %245 = arith.mulf %244, %243 : vector<32x8xf32>
    %246 = arith.addf %239, %245 : vector<32x8xf32>
    %c34_i32 = arith.constant 34 : i32
    %247 = arith.truncf %246 : vector<32x8xf32> to vector<32x8xbf16>
    %cst_76 = arith.constant dense<0.000000e+00> : vector<32x8xf32>
    %248 = tpu.matmul %0, %247, %cst_76 {dimension_numbers = #tpu.dot_dimension_numbers<[1], [0], [0], [1], [0, 0, 1, 1], [], []>} : vector<32x32xbf16>, vector<32x8xbf16>, vector<32x8xf32> -> vector<32x8xf32>
    %249 = arith.addf %248, %4 : vector<32x8xf32>
    %250 = math.tanh %249 : vector<32x8xf32>
    %cst_77 = arith.constant 2.000000e-02 : f32
    %251 = vector.broadcast %cst_77 : f32 to vector<32x8xf32>
    %252 = arith.mulf %251, %250 : vector<32x8xf32>
    %253 = arith.addf %246, %252 : vector<32x8xf32>
    %c35_i32 = arith.constant 35 : i32
    %254 = arith.truncf %253 : vector<32x8xf32> to vector<32x8xbf16>
    %cst_78 = arith.constant dense<0.000000e+00> : vector<32x8xf32>
    %255 = tpu.matmul %0, %254, %cst_78 {dimension_numbers = #tpu.dot_dimension_numbers<[1], [0], [0], [1], [0, 0, 1, 1], [], []>} : vector<32x32xbf16>, vector<32x8xbf16>, vector<32x8xf32> -> vector<32x8xf32>
    %256 = arith.addf %255, %4 : vector<32x8xf32>
    %257 = math.tanh %256 : vector<32x8xf32>
    %cst_79 = arith.constant 2.000000e-02 : f32
    %258 = vector.broadcast %cst_79 : f32 to vector<32x8xf32>
    %259 = arith.mulf %258, %257 : vector<32x8xf32>
    %260 = arith.addf %253, %259 : vector<32x8xf32>
    %c36_i32 = arith.constant 36 : i32
    %261 = arith.truncf %260 : vector<32x8xf32> to vector<32x8xbf16>
    %cst_80 = arith.constant dense<0.000000e+00> : vector<32x8xf32>
    %262 = tpu.matmul %0, %261, %cst_80 {dimension_numbers = #tpu.dot_dimension_numbers<[1], [0], [0], [1], [0, 0, 1, 1], [], []>} : vector<32x32xbf16>, vector<32x8xbf16>, vector<32x8xf32> -> vector<32x8xf32>
    %263 = arith.addf %262, %4 : vector<32x8xf32>
    %264 = math.tanh %263 : vector<32x8xf32>
    %cst_81 = arith.constant 2.000000e-02 : f32
    %265 = vector.broadcast %cst_81 : f32 to vector<32x8xf32>
    %266 = arith.mulf %265, %264 : vector<32x8xf32>
    %267 = arith.addf %260, %266 : vector<32x8xf32>
    %c37_i32 = arith.constant 37 : i32
    %268 = arith.truncf %267 : vector<32x8xf32> to vector<32x8xbf16>
    %cst_82 = arith.constant dense<0.000000e+00> : vector<32x8xf32>
    %269 = tpu.matmul %0, %268, %cst_82 {dimension_numbers = #tpu.dot_dimension_numbers<[1], [0], [0], [1], [0, 0, 1, 1], [], []>} : vector<32x32xbf16>, vector<32x8xbf16>, vector<32x8xf32> -> vector<32x8xf32>
    %270 = arith.addf %269, %4 : vector<32x8xf32>
    %271 = math.tanh %270 : vector<32x8xf32>
    %cst_83 = arith.constant 2.000000e-02 : f32
    %272 = vector.broadcast %cst_83 : f32 to vector<32x8xf32>
    %273 = arith.mulf %272, %271 : vector<32x8xf32>
    %274 = arith.addf %267, %273 : vector<32x8xf32>
    %c38_i32 = arith.constant 38 : i32
    %275 = arith.truncf %274 : vector<32x8xf32> to vector<32x8xbf16>
    %cst_84 = arith.constant dense<0.000000e+00> : vector<32x8xf32>
    %276 = tpu.matmul %0, %275, %cst_84 {dimension_numbers = #tpu.dot_dimension_numbers<[1], [0], [0], [1], [0, 0, 1, 1], [], []>} : vector<32x32xbf16>, vector<32x8xbf16>, vector<32x8xf32> -> vector<32x8xf32>
    %277 = arith.addf %276, %4 : vector<32x8xf32>
    %278 = math.tanh %277 : vector<32x8xf32>
    %cst_85 = arith.constant 2.000000e-02 : f32
    %279 = vector.broadcast %cst_85 : f32 to vector<32x8xf32>
    %280 = arith.mulf %279, %278 : vector<32x8xf32>
    %281 = arith.addf %274, %280 : vector<32x8xf32>
    %c39_i32 = arith.constant 39 : i32
    %282 = arith.truncf %281 : vector<32x8xf32> to vector<32x8xbf16>
    %cst_86 = arith.constant dense<0.000000e+00> : vector<32x8xf32>
    %283 = tpu.matmul %0, %282, %cst_86 {dimension_numbers = #tpu.dot_dimension_numbers<[1], [0], [0], [1], [0, 0, 1, 1], [], []>} : vector<32x32xbf16>, vector<32x8xbf16>, vector<32x8xf32> -> vector<32x8xf32>
    %284 = arith.addf %283, %4 : vector<32x8xf32>
    %285 = math.tanh %284 : vector<32x8xf32>
    %cst_87 = arith.constant 2.000000e-02 : f32
    %286 = vector.broadcast %cst_87 : f32 to vector<32x8xf32>
    %287 = arith.mulf %286, %285 : vector<32x8xf32>
    %288 = arith.addf %281, %287 : vector<32x8xf32>
    %c40_i32 = arith.constant 40 : i32
    %289 = arith.truncf %288 : vector<32x8xf32> to vector<32x8xbf16>
    %cst_88 = arith.constant dense<0.000000e+00> : vector<32x8xf32>
    %290 = tpu.matmul %0, %289, %cst_88 {dimension_numbers = #tpu.dot_dimension_numbers<[1], [0], [0], [1], [0, 0, 1, 1], [], []>} : vector<32x32xbf16>, vector<32x8xbf16>, vector<32x8xf32> -> vector<32x8xf32>
    %291 = arith.addf %290, %4 : vector<32x8xf32>
    %292 = math.tanh %291 : vector<32x8xf32>
    %cst_89 = arith.constant 2.000000e-02 : f32
    %293 = vector.broadcast %cst_89 : f32 to vector<32x8xf32>
    %294 = arith.mulf %293, %292 : vector<32x8xf32>
    %295 = arith.addf %288, %294 : vector<32x8xf32>
    %c41_i32 = arith.constant 41 : i32
    %296 = arith.truncf %295 : vector<32x8xf32> to vector<32x8xbf16>
    %cst_90 = arith.constant dense<0.000000e+00> : vector<32x8xf32>
    %297 = tpu.matmul %0, %296, %cst_90 {dimension_numbers = #tpu.dot_dimension_numbers<[1], [0], [0], [1], [0, 0, 1, 1], [], []>} : vector<32x32xbf16>, vector<32x8xbf16>, vector<32x8xf32> -> vector<32x8xf32>
    %298 = arith.addf %297, %4 : vector<32x8xf32>
    %299 = math.tanh %298 : vector<32x8xf32>
    %cst_91 = arith.constant 2.000000e-02 : f32
    %300 = vector.broadcast %cst_91 : f32 to vector<32x8xf32>
    %301 = arith.mulf %300, %299 : vector<32x8xf32>
    %302 = arith.addf %295, %301 : vector<32x8xf32>
    %c42_i32 = arith.constant 42 : i32
    %303 = arith.truncf %302 : vector<32x8xf32> to vector<32x8xbf16>
    %cst_92 = arith.constant dense<0.000000e+00> : vector<32x8xf32>
    %304 = tpu.matmul %0, %303, %cst_92 {dimension_numbers = #tpu.dot_dimension_numbers<[1], [0], [0], [1], [0, 0, 1, 1], [], []>} : vector<32x32xbf16>, vector<32x8xbf16>, vector<32x8xf32> -> vector<32x8xf32>
    %305 = arith.addf %304, %4 : vector<32x8xf32>
    %306 = math.tanh %305 : vector<32x8xf32>
    %cst_93 = arith.constant 2.000000e-02 : f32
    %307 = vector.broadcast %cst_93 : f32 to vector<32x8xf32>
    %308 = arith.mulf %307, %306 : vector<32x8xf32>
    %309 = arith.addf %302, %308 : vector<32x8xf32>
    %c43_i32 = arith.constant 43 : i32
    %310 = arith.truncf %309 : vector<32x8xf32> to vector<32x8xbf16>
    %cst_94 = arith.constant dense<0.000000e+00> : vector<32x8xf32>
    %311 = tpu.matmul %0, %310, %cst_94 {dimension_numbers = #tpu.dot_dimension_numbers<[1], [0], [0], [1], [0, 0, 1, 1], [], []>} : vector<32x32xbf16>, vector<32x8xbf16>, vector<32x8xf32> -> vector<32x8xf32>
    %312 = arith.addf %311, %4 : vector<32x8xf32>
    %313 = math.tanh %312 : vector<32x8xf32>
    %cst_95 = arith.constant 2.000000e-02 : f32
    %314 = vector.broadcast %cst_95 : f32 to vector<32x8xf32>
    %315 = arith.mulf %314, %313 : vector<32x8xf32>
    %316 = arith.addf %309, %315 : vector<32x8xf32>
    %c44_i32 = arith.constant 44 : i32
    %317 = arith.truncf %316 : vector<32x8xf32> to vector<32x8xbf16>
    %cst_96 = arith.constant dense<0.000000e+00> : vector<32x8xf32>
    %318 = tpu.matmul %0, %317, %cst_96 {dimension_numbers = #tpu.dot_dimension_numbers<[1], [0], [0], [1], [0, 0, 1, 1], [], []>} : vector<32x32xbf16>, vector<32x8xbf16>, vector<32x8xf32> -> vector<32x8xf32>
    %319 = arith.addf %318, %4 : vector<32x8xf32>
    %320 = math.tanh %319 : vector<32x8xf32>
    %cst_97 = arith.constant 2.000000e-02 : f32
    %321 = vector.broadcast %cst_97 : f32 to vector<32x8xf32>
    %322 = arith.mulf %321, %320 : vector<32x8xf32>
    %323 = arith.addf %316, %322 : vector<32x8xf32>
    %c45_i32 = arith.constant 45 : i32
    %324 = arith.truncf %323 : vector<32x8xf32> to vector<32x8xbf16>
    %cst_98 = arith.constant dense<0.000000e+00> : vector<32x8xf32>
    %325 = tpu.matmul %0, %324, %cst_98 {dimension_numbers = #tpu.dot_dimension_numbers<[1], [0], [0], [1], [0, 0, 1, 1], [], []>} : vector<32x32xbf16>, vector<32x8xbf16>, vector<32x8xf32> -> vector<32x8xf32>
    %326 = arith.addf %325, %4 : vector<32x8xf32>
    %327 = math.tanh %326 : vector<32x8xf32>
    %cst_99 = arith.constant 2.000000e-02 : f32
    %328 = vector.broadcast %cst_99 : f32 to vector<32x8xf32>
    %329 = arith.mulf %328, %327 : vector<32x8xf32>
    %330 = arith.addf %323, %329 : vector<32x8xf32>
    %c46_i32 = arith.constant 46 : i32
    %331 = arith.truncf %330 : vector<32x8xf32> to vector<32x8xbf16>
    %cst_100 = arith.constant dense<0.000000e+00> : vector<32x8xf32>
    %332 = tpu.matmul %0, %331, %cst_100 {dimension_numbers = #tpu.dot_dimension_numbers<[1], [0], [0], [1], [0, 0, 1, 1], [], []>} : vector<32x32xbf16>, vector<32x8xbf16>, vector<32x8xf32> -> vector<32x8xf32>
    %333 = arith.addf %332, %4 : vector<32x8xf32>
    %334 = math.tanh %333 : vector<32x8xf32>
    %cst_101 = arith.constant 2.000000e-02 : f32
    %335 = vector.broadcast %cst_101 : f32 to vector<32x8xf32>
    %336 = arith.mulf %335, %334 : vector<32x8xf32>
    %337 = arith.addf %330, %336 : vector<32x8xf32>
    %c47_i32 = arith.constant 47 : i32
    %338 = arith.truncf %337 : vector<32x8xf32> to vector<32x8xbf16>
    %cst_102 = arith.constant dense<0.000000e+00> : vector<32x8xf32>
    %339 = tpu.matmul %0, %338, %cst_102 {dimension_numbers = #tpu.dot_dimension_numbers<[1], [0], [0], [1], [0, 0, 1, 1], [], []>} : vector<32x32xbf16>, vector<32x8xbf16>, vector<32x8xf32> -> vector<32x8xf32>
    %340 = arith.addf %339, %4 : vector<32x8xf32>
    %341 = math.tanh %340 : vector<32x8xf32>
    %cst_103 = arith.constant 2.000000e-02 : f32
    %342 = vector.broadcast %cst_103 : f32 to vector<32x8xf32>
    %343 = arith.mulf %342, %341 : vector<32x8xf32>
    %344 = arith.addf %337, %343 : vector<32x8xf32>
    %c48_i32 = arith.constant 48 : i32
    %345 = arith.truncf %344 : vector<32x8xf32> to vector<32x8xbf16>
    %cst_104 = arith.constant dense<0.000000e+00> : vector<32x8xf32>
    %346 = tpu.matmul %0, %345, %cst_104 {dimension_numbers = #tpu.dot_dimension_numbers<[1], [0], [0], [1], [0, 0, 1, 1], [], []>} : vector<32x32xbf16>, vector<32x8xbf16>, vector<32x8xf32> -> vector<32x8xf32>
    %347 = arith.addf %346, %4 : vector<32x8xf32>
    %348 = math.tanh %347 : vector<32x8xf32>
    %cst_105 = arith.constant 2.000000e-02 : f32
    %349 = vector.broadcast %cst_105 : f32 to vector<32x8xf32>
    %350 = arith.mulf %349, %348 : vector<32x8xf32>
    %351 = arith.addf %344, %350 : vector<32x8xf32>
    %c49_i32 = arith.constant 49 : i32
    %352 = arith.truncf %351 : vector<32x8xf32> to vector<32x8xbf16>
    %cst_106 = arith.constant dense<0.000000e+00> : vector<32x8xf32>
    %353 = tpu.matmul %0, %352, %cst_106 {dimension_numbers = #tpu.dot_dimension_numbers<[1], [0], [0], [1], [0, 0, 1, 1], [], []>} : vector<32x32xbf16>, vector<32x8xbf16>, vector<32x8xf32> -> vector<32x8xf32>
    %354 = arith.addf %353, %4 : vector<32x8xf32>
    %355 = math.tanh %354 : vector<32x8xf32>
    %cst_107 = arith.constant 2.000000e-02 : f32
    %356 = vector.broadcast %cst_107 : f32 to vector<32x8xf32>
    %357 = arith.mulf %356, %355 : vector<32x8xf32>
    %358 = arith.addf %351, %357 : vector<32x8xf32>
    %359 = arith.truncf %358 : vector<32x8xf32> to vector<32x8xbf16>
    %cst_108 = arith.constant dense<0.000000e+00> : vector<8x8xf32>
    %360 = tpu.matmul %1, %359, %cst_108 {dimension_numbers = #tpu.dot_dimension_numbers<[1], [0], [0], [1], [0, 0, 1, 1], [], []>} : vector<8x32xbf16>, vector<32x8xbf16>, vector<8x8xf32> -> vector<8x8xf32>
    %361 = arith.addf %360, %7 : vector<8x8xf32>
    %cst_109 = arith.constant dense<0xFF800000> : vector<8xf32>
    %362 = vector.multi_reduction <maximumf>, %361, %cst_109 [0] : vector<8x8xf32> to vector<8xf32>
    %363 = vector.shape_cast %362 : vector<8xf32> to vector<1x8xf32>
    %364 = vector.broadcast %363 : vector<1x8xf32> to vector<8x8xf32>
    %365 = arith.subf %361, %364 : vector<8x8xf32>
    %366 = math.exp %365 : vector<8x8xf32>
    %cst_110 = arith.constant dense<0.000000e+00> : vector<8xf32>
    %367 = vector.multi_reduction <add>, %366, %cst_110 [0] : vector<8x8xf32> to vector<8xf32>
    %368 = vector.shape_cast %367 : vector<8xf32> to vector<1x8xf32>
    %369 = math.log %368 : vector<1x8xf32>
    %370 = vector.broadcast %369 : vector<1x8xf32> to vector<8x8xf32>
    %371 = arith.subf %365, %370 : vector<8x8xf32>
    %c0_111 = arith.constant 0 : index
    %c0_112 = arith.constant 0 : index
    %372 = vector.load %arg6[%c0_111, %c0_112] : memref<8x8xf32, #tpu.memory_space<vmem>>, vector<8x8xf32>
    tpu.vector_store %arg6[%c0_111, %c0_112], %371 {strides = array<i32>} : memref<8x8xf32, #tpu.memory_space<vmem>>, vector<8x8xf32>,
    return
  }
  func.func @transform_0(%arg0: i32) -> (i32, i32) {
    %c0_i32 = arith.constant 0 : i32
    %c0_i32_0 = arith.constant 0 : i32
    return %c0_i32, %arg0 : i32, i32
  }
  func.func @transform_1(%arg0: i32) -> (i32, i32) {
    %c0_i32 = arith.constant 0 : i32
    %c0_i32_0 = arith.constant 0 : i32
    %c0_i32_1 = arith.constant 0 : i32
    return %c0_i32, %c0_i32_0 : i32, i32
  }
  func.func @transform_2(%arg0: i32) -> (i32, i32) {
    %c0_i32 = arith.constant 0 : i32
    %c0_i32_0 = arith.constant 0 : i32
    %c0_i32_1 = arith.constant 0 : i32
    return %c0_i32, %c0_i32_0 : i32, i32
  }
  func.func @transform_3(%arg0: i32) -> (i32, i32) {
    %c0_i32 = arith.constant 0 : i32
    %c0_i32_0 = arith.constant 0 : i32
    %c0_i32_1 = arith.constant 0 : i32
    return %c0_i32, %c0_i32_0 : i32, i32
  }
  func.func @transform_4(%arg0: i32) -> (i32, i32) {
    %c0_i32 = arith.constant 0 : i32
    %c0_i32_0 = arith.constant 0 : i32
    %c0_i32_1 = arith.constant 0 : i32
    return %c0_i32, %c0_i32_0 : i32, i32
  }
  func.func @transform_5(%arg0: i32) -> (i32, i32) {
    %c0_i32 = arith.constant 0 : i32
    %c0_i32_0 = arith.constant 0 : i32
    return %c0_i32, %arg0 : i32, i32
  }
}

</mosaic_0001>

<llo_original>
// kernel: tpu_custom_call.1
$region0: #{tpu_custom_call.1}
  #allocation0 [shape = 'u32[]', space=smem, size = 0x4, offset = 0x4, fixed_abs, tag = 'smem constant byte address 0x4 - core index']
  #allocation1 [shape = 'u32[72,128]{1,0:T(1,128)}', space=vmem, size = 0x9000, scoped, tag = 'internal scratch']
  %s0 = inlined_call_operand.vmem [shape: f32[32,8], index: 0, kind: input, shape index: {}]
  %s1 = inlined_call_operand.vmem [shape: bf16[32,32], index: 1, kind: input, shape index: {}]
  %s2 = inlined_call_operand.vmem [shape: f32[32,1], index: 2, kind: input, shape index: {}]
  %s3 = inlined_call_operand.vmem [shape: bf16[8,32], index: 3, kind: input, shape index: {}]
  %s4 = inlined_call_operand.vmem [shape: f32[8,1], index: 4, kind: input, shape index: {}]
  %s5 = inlined_call_operand.hbm [shape: f32[8,8], index: 5, kind: output, shape index: {}]
  %s6 = sld [smem:[#allocation0]]
  $region30: #{tpu_custom_call.1} parent=0
    _
  %s8 = ssub.s32 1, %s6
  %s9 = scalar_select 0, %s8, %s6
  $region1: #{tpu_custom_call.1} parent=0
    #allocation2 [shape = 'u8[4096]{0}', space=vmem, size = 0x1000, scoped, tag = 'output window, operand 0, single buffered']
    #allocation3 [shape = 's32[1]{0}', space=sflag, size = 0x4, scoped, tag = 'scoped memory for tpu_custom_call.1']
    %10 = vsyncpa [#allocation3], 0
    // Predicated region
    $region2: #{tpu_custom_call.1} parent=1 // pred_check
      _
    $region3: #{tpu_custom_call.1} parent=1 // pred_check_branch
      %12 = sbr.rel (0) target = $region5
    $region4: #{tpu_custom_call.1} parent=1 // pred_region
      _
    $region5: #{tpu_custom_call.1} parent=1 // pred_fallthru
      _
    // Predicated region
    $region6: #{tpu_custom_call.1} parent=1 // pred_check
      _
    $region7: #{tpu_custom_call.1} parent=1 // pred_check_branch
      %14 = sbr.rel (0) target = $region9
    $region8: #{tpu_custom_call.1} parent=1 // pred_region
      _
    $region9: #{tpu_custom_call.1} parent=1 // pred_fallthru
      _
    // Predicated region
    $region10: #{tpu_custom_call.1} parent=1 // pred_check
      _
    $region11: #{tpu_custom_call.1} parent=1 // pred_check_branch
      %16 = sbr.rel (0) target = $region13
    $region12: #{tpu_custom_call.1} parent=1 // pred_region
      _
    $region13: #{tpu_custom_call.1} parent=1 // pred_fallthru
      _
    // Predicated region
    $region14: #{tpu_custom_call.1} parent=1 // pred_check
      _
    $region15: #{tpu_custom_call.1} parent=1 // pred_check_branch
      %18 = sbr.rel (0) target = $region17
    $region16: #{tpu_custom_call.1} parent=1 // pred_region
      _
    $region17: #{tpu_custom_call.1} parent=1 // pred_fallthru
      _
    // Predicated region
    $region18: #{tpu_custom_call.1} parent=1 // pred_check
      _
    $region19: #{tpu_custom_call.1} parent=1 // pred_check_branch
      %20 = sbr.rel (0) target = $region21
    $region20: #{tpu_custom_call.1} parent=1 // pred_region
      _
    $region21: #{tpu_custom_call.1} parent=1 // pred_fallthru
      _
    %v22 = vld [vmem:[%s1] sm:$0xf]
    %v23 = vld [vmem:[%s1 + $0x4] sm:$0xf]
    %v24 = vld [vmem:[%s1 + $0x8] sm:$0xf]
    %v25 = vld [vmem:[%s1 + $0xc] sm:$0xf]
    %v26 = vld [vmem:[%s3] sm:$0xf]
    %v27 = vld [vmem:[%s2] sm:$0xff]
    %v28 = vld [vmem:[%s2 + $0x8] sm:$0xff]
    %v29 = vld [vmem:[%s2 + $0x10] sm:$0xff]
    %v30 = vld [vmem:[%s2 + $0x18] sm:$0xff]
    %32 = vset.pattern.permute.xlu0 0
    %33 = vperm.xlu0 %32, %v27
    %v34 = vpop.permute.xlu0 %33
    %37 = vset.pattern.permute.xlu0 0
    %38 = vperm.xlu0 %37, %v28
    %v39 = vpop.permute.xlu0 %38
    %42 = vset.pattern.permute.xlu0 0
    %43 = vperm.xlu0 %42, %v29
    %v44 = vpop.permute.xlu0 %43
    %47 = vset.pattern.permute.xlu0 0
    %48 = vperm.xlu0 %47, %v30
    %v49 = vpop.permute.xlu0 %48
    %v51 = vld [vmem:[%s4] sm:$0xff]
    %53 = vset.pattern.permute.xlu0 0
    %54 = vperm.xlu0 %53, %v51
    %v55 = vpop.permute.xlu0 %54
    %v57 = vld [vmem:[%s0] sm:$0xff]
    %v58 = vld [vmem:[%s0 + $0x8] sm:$0xff]
    %v59 = vld [vmem:[%s0 + $0x10] sm:$0xff]
    %v60 = vld [vmem:[%s0 + $0x18] sm:$0xff]
    %v61 = vpack.c.bf16 %v58, %v57
    %v62 = vpack.c.bf16 %v60, %v59
    %v67 = vunpack.c.l.b16 %v22
    %v68 = vunpack.c.l.b16 %v23
    %v69 = vunpack.c.l.b16 %v24
    %v70 = vunpack.c.l.b16 %v25
    %v71 = vpack.c.b16 %v68, %v67
    %v72 = vpack.c.b16 %v70, %v69
    %vm73 = vcmask 261120
    %v75 = vsel %vm73, %v71, 0
    %v78 = vsel %vm73, %v72, 0
    %80 = vmatpush.bf16.msra.mxu0 0
    %81 = vmatpush.bf16.msra.mxu0 0
    %82 = vmatpush.bf16.msra.mxu0 0
    %83 = vmatpush.bf16.msra.mxu0 0
    %84 = vmatpush.bf16.msra.mxu0 0
    %85 = vmatpush.bf16.msra.mxu0 0
    %86 = vmatpush.bf16.msra.mxu0 %v62
    %87 = vmatpush.bf16.msra.mxu0 %v61
    %88 = vmatmul.bf16.gmra.mxu0 %v75
    %v89 = vpop.f32.mrf.mxu0
    %v90 = vadd.f32 %v34, %v89
    %v91 = vpop.f32.mrf.mxu0
    %v92 = vadd.f32 %v39, %v91
    %93 = vmatmul.bf16.gmra.mxu0 %v78
    %v94 = vpop.f32.mrf.mxu0
    %v95 = vadd.f32 %v44, %v94
    %v96 = vpop.f32.mrf.mxu0
    %v97 = vadd.f32 %v49, %v96
    %98 = vdwg.mxu0
    %v99 = vtanh.pop %v90
    %v100 = vtanh.pop %v92
    %v101 = vtanh.pop %v95
    %v102 = vtanh.pop %v97
    %v103 = vmul.f32 %v99, 0.02
    %v104 = vmul.f32 %v100, 0.02
    %v105 = vmul.f32 %v101, 0.02
    %v106 = vmul.f32 %v102, 0.02
    %v107 = vadd.f32 %v57, %v103
    %v108 = vadd.f32 %v58, %v104
    %v109 = vadd.f32 %v59, %v105
    %v110 = vadd.f32 %v60, %v106
    %v111 = vpack.c.bf16 %v108, %v107
    %v112 = vpack.c.bf16 %v110, %v109
    %113 = vmatpush.bf16.msra.mxu0 0
    %114 = vmatpush.bf16.msra.mxu0 0
    %115 = vmatpush.bf16.msra.mxu0 0
    %116 = vmatpush.bf16.msra.mxu0 0
    %117 = vmatpush.bf16.msra.mxu0 0
    %118 = vmatpush.bf16.msra.mxu0 0
    %119 = vmatpush.bf16.msra.mxu0 %v112
    %120 = vmatpush.bf16.msra.mxu0 %v111
    %121 = vmatmul.bf16.gmra.mxu0 %v75
    %v122 = vpop.f32.mrf.mxu0
    %v123 = vadd.f32 %v34, %v122
    %v124 = vpop.f32.mrf.mxu0
    %v125 = vadd.f32 %v39, %v124
    %126 = vmatmul.bf16.gmra.mxu0 %v78
    %v127 = vpop.f32.mrf.mxu0
    %v128 = vadd.f32 %v44, %v127
    %v129 = vpop.f32.mrf.mxu0
    %v130 = vadd.f32 %v49, %v129
    %131 = vdwg.mxu0
    %v132 = vtanh.pop %v123
    %v133 = vtanh.pop %v125
    %v134 = vtanh.pop %v128
    %v135 = vtanh.pop %v130
    %v136 = vmul.f32 %v132, 0.02
    %v137 = vmul.f32 %v133, 0.02
    %v138 = vmul.f32 %v134, 0.02
    %v139 = vmul.f32 %v135, 0.02
    %v140 = vadd.f32 %v107, %v136
    %v141 = vadd.f32 %v108, %v137
    %v142 = vadd.f32 %v109, %v138
    %v143 = vadd.f32 %v110, %v139
    %v144 = vpack.c.bf16 %v141, %v140
    %v145 = vpack.c.bf16 %v143, %v142
    %146 = vmatpush.bf16.msra.mxu0 0
    %147 = vmatpush.bf16.msra.mxu0 0
    %148 = vmatpush.bf16.msra.mxu0 0
    %149 = vmatpush.bf16.msra.mxu0 0
    %150 = vmatpush.bf16.msra.mxu0 0
    %151 = vmatpush.bf16.msra.mxu0 0
    %152 = vmatpush.bf16.msra.mxu0 %v145
    %153 = vmatpush.bf16.msra.mxu0 %v144
    %154 = vmatmul.bf16.gmra.mxu0 %v75
    %v155 = vpop.f32.mrf.mxu0
    %v156 = vadd.f32 %v34, %v155
    %v157 = vpop.f32.mrf.mxu0
    %v158 = vadd.f32 %v39, %v157
    %159 = vmatmul.bf16.gmra.mxu0 %v78
    %v160 = vpop.f32.mrf.mxu0
    %v161 = vadd.f32 %v44, %v160
    %v162 = vpop.f32.mrf.mxu0
    %v163 = vadd.f32 %v49, %v162
    %164 = vdwg.mxu0
    %v165 = vtanh.pop %v156
    %v166 = vtanh.pop %v158
    %v167 = vtanh.pop %v161
    %v168 = vtanh.pop %v163
    %v169 = vmul.f32 %v165, 0.02
    %v170 = vmul.f32 %v166, 0.02
    %v171 = vmul.f32 %v167, 0.02
    %v172 = vmul.f32 %v168, 0.02
    %v173 = vadd.f32 %v140, %v169
    %v174 = vadd.f32 %v141, %v170
    %v175 = vadd.f32 %v142, %v171
    %v176 = vadd.f32 %v143, %v172
    %v177 = vpack.c.bf16 %v174, %v173
    %v178 = vpack.c.bf16 %v176, %v175
    %179 = vmatpush.bf16.msra.mxu0 0
    %180 = vmatpush.bf16.msra.mxu0 0
    %181 = vmatpush.bf16.msra.mxu0 0
    %182 = vmatpush.bf16.msra.mxu0 0
    %183 = vmatpush.bf16.msra.mxu0 0
    %184 = vmatpush.bf16.msra.mxu0 0
    %185 = vmatpush.bf16.msra.mxu0 %v178
    %186 = vmatpush.bf16.msra.mxu0 %v177
    %187 = vmatmul.bf16.gmra.mxu0 %v75
    %v188 = vpop.f32.mrf.mxu0
    %v189 = vadd.f32 %v34, %v188
    %v190 = vpop.f32.mrf.mxu0
    %v191 = vadd.f32 %v39, %v190
    %192 = vmatmul.bf16.gmra.mxu0 %v78
    %v193 = vpop.f32.mrf.mxu0
    %v194 = vadd.f32 %v44, %v193
    %v195 = vpop.f32.mrf.mxu0
    %v196 = vadd.f32 %v49, %v195
    %197 = vdwg.mxu0
    %v198 = vtanh.pop %v189
    %v199 = vtanh.pop %v191
    %v200 = vtanh.pop %v194
    %v201 = vtanh.pop %v196
    %v202 = vmul.f32 %v198, 0.02
    %v203 = vmul.f32 %v199, 0.02
    %v204 = vmul.f32 %v200, 0.02
    %v205 = vmul.f32 %v201, 0.02
    %v206 = vadd.f32 %v173, %v202
    %v207 = vadd.f32 %v174, %v203
    %v208 = vadd.f32 %v175, %v204
    %v209 = vadd.f32 %v176, %v205
    %v210 = vpack.c.bf16 %v207, %v206
    %v211 = vpack.c.bf16 %v209, %v208
    %212 = vmatpush.bf16.msra.mxu0 0
    %213 = vmatpush.bf16.msra.mxu0 0
    %214 = vmatpush.bf16.msra.mxu0 0
    %215 = vmatpush.bf16.msra.mxu0 0
    %216 = vmatpush.bf16.msra.mxu0 0
    %217 = vmatpush.bf16.msra.mxu0 0
    %218 = vmatpush.bf16.msra.mxu0 %v211
    %219 = vmatpush.bf16.msra.mxu0 %v210
    %220 = vmatmul.bf16.gmra.mxu0 %v75
    %v221 = vpop.f32.mrf.mxu0
    %v222 = vadd.f32 %v34, %v221
    %v223 = vpop.f32.mrf.mxu0
    %v224 = vadd.f32 %v39, %v223
    %225 = vmatmul.bf16.gmra.mxu0 %v78
    %v226 = vpop.f32.mrf.mxu0
    %v227 = vadd.f32 %v44, %v226
    %v228 = vpop.f32.mrf.mxu0
    %v229 = vadd.f32 %v49, %v228
    %230 = vdwg.mxu0
    %v231 = vtanh.pop %v222
    %v232 = vtanh.pop %v224
    %v233 = vtanh.pop %v227
    %v234 = vtanh.pop %v229
    %v235 = vmul.f32 %v231, 0.02
    %v236 = vmul.f32 %v232, 0.02
    %v237 = vmul.f32 %v233, 0.02
    %v238 = vmul.f32 %v234, 0.02
    %v239 = vadd.f32 %v206, %v235
    %v240 = vadd.f32 %v207, %v236
    %v241 = vadd.f32 %v208, %v237
    %v242 = vadd.f32 %v209, %v238
    %v243 = vpack.c.bf16 %v240, %v239
    %v244 = vpack.c.bf16 %v242, %v241
    %245 = vmatpush.bf16.msra.mxu0 0
    %246 = vmatpush.bf16.msra.mxu0 0
    %247 = vmatpush.bf16.msra.mxu0 0
    %248 = vmatpush.bf16.msra.mxu0 0
    %249 = vmatpush.bf16.msra.mxu0 0
    %250 = vmatpush.bf16.msra.mxu0 0
    %251 = vmatpush.bf16.msra.mxu0 %v244
    %252 = vmatpush.bf16.msra.mxu0 %v243
    %253 = vmatmul.bf16.gmra.mxu0 %v75
    %v254 = vpop.f32.mrf.mxu0
    %v255 = vadd.f32 %v34, %v254
    %v256 = vpop.f32.mrf.mxu0
    %v257 = vadd.f32 %v39, %v256
    %258 = vmatmul.bf16.gmra.mxu0 %v78
    %v259 = vpop.f32.mrf.mxu0
    %v260 = vadd.f32 %v44, %v259
    %v261 = vpop.f32.mrf.mxu0
    %v262 = vadd.f32 %v49, %v261
    %263 = vdwg.mxu0
    %v264 = vtanh.pop %v255
    %v265 = vtanh.pop %v257
    %v266 = vtanh.pop %v260
    %v267 = vtanh.pop %v262
    %v268 = vmul.f32 %v264, 0.02
    %v269 = vmul.f32 %v265, 0.02
    %v270 = vmul.f32 %v266, 0.02
    %v271 = vmul.f32 %v267, 0.02
    %v272 = vadd.f32 %v239, %v268
    %v273 = vadd.f32 %v240, %v269
    %v274 = vadd.f32 %v241, %v270
    %v275 = vadd.f32 %v242, %v271
    %v276 = vpack.c.bf16 %v273, %v272
    %v277 = vpack.c.bf16 %v275, %v274
    %278 = vmatpush.bf16.msra.mxu0 0
    %279 = vmatpush.bf16.msra.mxu0 0
    %280 = vmatpush.bf16.msra.mxu0 0
    %281 = vmatpush.bf16.msra.mxu0 0
    %282 = vmatpush.bf16.msra.mxu0 0
    %283 = vmatpush.bf16.msra.mxu0 0
    %284 = vmatpush.bf16.msra.mxu0 %v277
    %285 = vmatpush.bf16.msra.mxu0 %v276
    %286 = vmatmul.bf16.gmra.mxu0 %v75
    %v287 = vpop.f32.mrf.mxu0
    %v288 = vadd.f32 %v34, %v287
    %v289 = vpop.f32.mrf.mxu0
    %v290 = vadd.f32 %v39, %v289
    %291 = vmatmul.bf16.gmra.mxu0 %v78
    %v292 = vpop.f32.mrf.mxu0
    %v293 = vadd.f32 %v44, %v292
    %v294 = vpop.f32.mrf.mxu0
    %v295 = vadd.f32 %v49, %v294
    %296 = vdwg.mxu0
    %v297 = vtanh.pop %v288
    %v298 = vtanh.pop %v290
    %v299 = vtanh.pop %v293
    %v300 = vtanh.pop %v295
    %v301 = vmul.f32 %v297, 0.02
    %v302 = vmul.f32 %v298, 0.02
    %v303 = vmul.f32 %v299, 0.02
    %v304 = vmul.f32 %v300, 0.02
    %v305 = vadd.f32 %v272, %v301
    %v306 = vadd.f32 %v273, %v302
    %v307 = vadd.f32 %v274, %v303
    %v308 = vadd.f32 %v275, %v304
    %v309 = vpack.c.bf16 %v306, %v305
    %v310 = vpack.c.bf16 %v308, %v307
    %311 = vmatpush.bf16.msra.mxu0 0
    %312 = vmatpush.bf16.msra.mxu0 0
    %313 = vmatpush.bf16.msra.mxu0 0
    %314 = vmatpush.bf16.msra.mxu0 0
    %315 = vmatpush.bf16.msra.mxu0 0
    %316 = vmatpush.bf16.msra.mxu0 0
    %317 = vmatpush.bf16.msra.mxu0 %v310
    %318 = vmatpush.bf16.msra.mxu0 %v309
    %319 = vmatmul.bf16.gmra.mxu0 %v75
    %v320 = vpop.f32.mrf.mxu0
    %v321 = vadd.f32 %v34, %v320
    %v322 = vpop.f32.mrf.mxu0
    %v323 = vadd.f32 %v39, %v322
    %324 = vmatmul.bf16.gmra.mxu0 %v78
    %v325 = vpop.f32.mrf.mxu0
    %v326 = vadd.f32 %v44, %v325
    %v327 = vpop.f32.mrf.mxu0
    %v328 = vadd.f32 %v49, %v327
    %329 = vdwg.mxu0
    %v330 = vtanh.pop %v321
    %v331 = vtanh.pop %v323
    %v332 = vtanh.pop %v326
    %v333 = vtanh.pop %v328
    %v334 = vmul.f32 %v330, 0.02
    %v335 = vmul.f32 %v331, 0.02
    %v336 = vmul.f32 %v332, 0.02
    %v337 = vmul.f32 %v333, 0.02
    %v338 = vadd.f32 %v305, %v334
    %v339 = vadd.f32 %v306, %v335
    %v340 = vadd.f32 %v307, %v336
    %v341 = vadd.f32 %v308, %v337
    %v342 = vpack.c.bf16 %v339, %v338
    %v343 = vpack.c.bf16 %v341, %v340
    %344 = vmatpush.bf16.msra.mxu0 0
    %345 = vmatpush.bf16.msra.mxu0 0
    %346 = vmatpush.bf16.msra.mxu0 0
    %347 = vmatpush.bf16.msra.mxu0 0
    %348 = vmatpush.bf16.msra.mxu0 0
    %349 = vmatpush.bf16.msra.mxu0 0
    %350 = vmatpush.bf16.msra.mxu0 %v343
    %351 = vmatpush.bf16.msra.mxu0 %v342
    %352 = vmatmul.bf16.gmra.mxu0 %v75
    %v353 = vpop.f32.mrf.mxu0
    %v354 = vadd.f32 %v34, %v353
    %v355 = vpop.f32.mrf.mxu0
    %v356 = vadd.f32 %v39, %v355
    %357 = vmatmul.bf16.gmra.mxu0 %v78
    %v358 = vpop.f32.mrf.mxu0
    %v359 = vadd.f32 %v44, %v358
    %v360 = vpop.f32.mrf.mxu0
    %v361 = vadd.f32 %v49, %v360
    %362 = vdwg.mxu0
    %v363 = vtanh.pop %v354
    %v364 = vtanh.pop %v356
    %v365 = vtanh.pop %v359
    %v366 = vtanh.pop %v361
    %v367 = vmul.f32 %v363, 0.02
    %v368 = vmul.f32 %v364, 0.02
    %v369 = vmul.f32 %v365, 0.02
    %v370 = vmul.f32 %v366, 0.02
    %v371 = vadd.f32 %v338, %v367
    %v372 = vadd.f32 %v339, %v368
    %v373 = vadd.f32 %v340, %v369
    %v374 = vadd.f32 %v341, %v370
    %v375 = vpack.c.bf16 %v372, %v371
    %v376 = vpack.c.bf16 %v374, %v373
    %377 = vmatpush.bf16.msra.mxu0 0
    %378 = vmatpush.bf16.msra.mxu0 0
    %379 = vmatpush.bf16.msra.mxu0 0
    %380 = vmatpush.bf16.msra.mxu0 0
    %381 = vmatpush.bf16.msra.mxu0 0
    %382 = vmatpush.bf16.msra.mxu0 0
    %383 = vmatpush.bf16.msra.mxu0 %v376
    %384 = vmatpush.bf16.msra.mxu0 %v375
    %385 = vmatmul.bf16.gmra.mxu0 %v75
    %v386 = vpop.f32.mrf.mxu0
    %v387 = vadd.f32 %v34, %v386
    %v388 = vpop.f32.mrf.mxu0
    %v389 = vadd.f32 %v39, %v388
    %390 = vmatmul.bf16.gmra.mxu0 %v78
    %v391 = vpop.f32.mrf.mxu0
    %v392 = vadd.f32 %v44, %v391
    %v393 = vpop.f32.mrf.mxu0
    %v394 = vadd.f32 %v49, %v393
    %395 = vdwg.mxu0
    %v396 = vtanh.pop %v387
    %v397 = vtanh.pop %v389
    %v398 = vtanh.pop %v392
    %v399 = vtanh.pop %v394
    %v400 = vmul.f32 %v396, 0.02
    %v401 = vmul.f32 %v397, 0.02
    %v402 = vmul.f32 %v398, 0.02
    %v403 = vmul.f32 %v399, 0.02
    %v404 = vadd.f32 %v371, %v400
    %v405 = vadd.f32 %v372, %v401
    %v406 = vadd.f32 %v373, %v402
    %v407 = vadd.f32 %v374, %v403
    %v408 = vpack.c.bf16 %v405, %v404
    %v409 = vpack.c.bf16 %v407, %v406
    %410 = vmatpush.bf16.msra.mxu0 0
    %411 = vmatpush.bf16.msra.mxu0 0
    %412 = vmatpush.bf16.msra.mxu0 0
    %413 = vmatpush.bf16.msra.mxu0 0
    %414 = vmatpush.bf16.msra.mxu0 0
    %415 = vmatpush.bf16.msra.mxu0 0
    %416 = vmatpush.bf16.msra.mxu0 %v409
    %417 = vmatpush.bf16.msra.mxu0 %v408
    %418 = vmatmul.bf16.gmra.mxu0 %v75
    %v419 = vpop.f32.mrf.mxu0
    %v420 = vadd.f32 %v34, %v419
    %v421 = vpop.f32.mrf.mxu0
    %v422 = vadd.f32 %v39, %v421
    %423 = vmatmul.bf16.gmra.mxu0 %v78
    %v424 = vpop.f32.mrf.mxu0
    %v425 = vadd.f32 %v44, %v424
    %v426 = vpop.f32.mrf.mxu0
    %v427 = vadd.f32 %v49, %v426
    %428 = vdwg.mxu0
    %v429 = vtanh.pop %v420
    %v430 = vtanh.pop %v422
    %v431 = vtanh.pop %v425
    %v432 = vtanh.pop %v427
    %v433 = vmul.f32 %v429, 0.02
    %v434 = vmul.f32 %v430, 0.02
    %v435 = vmul.f32 %v431, 0.02
    %v436 = vmul.f32 %v432, 0.02
    %v437 = vadd.f32 %v404, %v433
    %v438 = vadd.f32 %v405, %v434
    %v439 = vadd.f32 %v406, %v435
    %v440 = vadd.f32 %v407, %v436
    %v441 = vpack.c.bf16 %v438, %v437
    %v442 = vpack.c.bf16 %v440, %v439
    %443 = vmatpush.bf16.msra.mxu0 0
    %444 = vmatpush.bf16.msra.mxu0 0
    %445 = vmatpush.bf16.msra.mxu0 0
    %446 = vmatpush.bf16.msra.mxu0 0
    %447 = vmatpush.bf16.msra.mxu0 0
    %448 = vmatpush.bf16.msra.mxu0 0
    %449 = vmatpush.bf16.msra.mxu0 %v442
    %450 = vmatpush.bf16.msra.mxu0 %v441
    %451 = vmatmul.bf16.gmra.mxu0 %v75
    %v452 = vpop.f32.mrf.mxu0
    %v453 = vadd.f32 %v34, %v452
    %v454 = vpop.f32.mrf.mxu0
    %v455 = vadd.f32 %v39, %v454
    %456 = vmatmul.bf16.gmra.mxu0 %v78
    %v457 = vpop.f32.mrf.mxu0
    %v458 = vadd.f32 %v44, %v457
    %v459 = vpop.f32.mrf.mxu0
    %v460 = vadd.f32 %v49, %v459
    %461 = vdwg.mxu0
    %v462 = vtanh.pop %v453
    %v463 = vtanh.pop %v455
    %v464 = vtanh.pop %v458
    %v465 = vtanh.pop %v460
    %v466 = vmul.f32 %v462, 0.02
    %v467 = vmul.f32 %v463, 0.02
    %v468 = vmul.f32 %v464, 0.02
    %v469 = vmul.f32 %v465, 0.02
    %v470 = vadd.f32 %v437, %v466
    %v471 = vadd.f32 %v438, %v467
    %v472 = vadd.f32 %v439, %v468
    %v473 = vadd.f32 %v440, %v469
    %v474 = vpack.c.bf16 %v471, %v470
    %v475 = vpack.c.bf16 %v473, %v472
    %476 = vmatpush.bf16.msra.mxu0 0
    %477 = vmatpush.bf16.msra.mxu0 0
    %478 = vmatpush.bf16.msra.mxu0 0
    %479 = vmatpush.bf16.msra.mxu0 0
    %480 = vmatpush.bf16.msra.mxu0 0
    %481 = vmatpush.bf16.msra.mxu0 0
    %482 = vmatpush.bf16.msra.mxu0 %v475
    %483 = vmatpush.bf16.msra.mxu0 %v474
    %484 = vmatmul.bf16.gmra.mxu0 %v75
    %v485 = vpop.f32.mrf.mxu0
    %v486 = vadd.f32 %v34, %v485
    %v487 = vpop.f32.mrf.mxu0
    %v488 = vadd.f32 %v39, %v487
    %489 = vmatmul.bf16.gmra.mxu0 %v78
    %v490 = vpop.f32.mrf.mxu0
    %v491 = vadd.f32 %v44, %v490
    %v492 = vpop.f32.mrf.mxu0
    %v493 = vadd.f32 %v49, %v492
    %494 = vdwg.mxu0
    %v495 = vtanh.pop %v486
    %v496 = vtanh.pop %v488
    %v497 = vtanh.pop %v491
    %v498 = vtanh.pop %v493
    %v499 = vmul.f32 %v495, 0.02
    %v500 = vmul.f32 %v496, 0.02
    %v501 = vmul.f32 %v497, 0.02
    %v502 = vmul.f32 %v498, 0.02
    %v503 = vadd.f32 %v470, %v499
    %v504 = vadd.f32 %v471, %v500
    %v505 = vadd.f32 %v472, %v501
    %v506 = vadd.f32 %v473, %v502
    %v507 = vpack.c.bf16 %v504, %v503
    %v508 = vpack.c.bf16 %v506, %v505
    %509 = vmatpush.bf16.msra.mxu0 0
    %510 = vmatpush.bf16.msra.mxu0 0
    %511 = vmatpush.bf16.msra.mxu0 0
    %512 = vmatpush.bf16.msra.mxu0 0
    %513 = vmatpush.bf16.msra.mxu0 0
    %514 = vmatpush.bf16.msra.mxu0 0
    %515 = vmatpush.bf16.msra.mxu0 %v508
    %516 = vmatpush.bf16.msra.mxu0 %v507
    %517 = vmatmul.bf16.gmra.mxu0 %v75
    %v518 = vpop.f32.mrf.mxu0
    %v519 = vadd.f32 %v34, %v518
    %v520 = vpop.f32.mrf.mxu0
    %v521 = vadd.f32 %v39, %v520
    %522 = vmatmul.bf16.gmra.mxu0 %v78
    %v523 = vpop.f32.mrf.mxu0
    %v524 = vadd.f32 %v44, %v523
    %v525 = vpop.f32.mrf.mxu0
    %v526 = vadd.f32 %v49, %v525
    %527 = vdwg.mxu0
    %v528 = vtanh.pop %v519
    %v529 = vtanh.pop %v521
    %v530 = vtanh.pop %v524
    %v531 = vtanh.pop %v526
    %v532 = vmul.f32 %v528, 0.02
    %v533 = vmul.f32 %v529, 0.02
    %v534 = vmul.f32 %v530, 0.02
    %v535 = vmul.f32 %v531, 0.02
    %v536 = vadd.f32 %v503, %v532
    %v537 = vadd.f32 %v504, %v533
    %v538 = vadd.f32 %v505, %v534
    %v539 = vadd.f32 %v506, %v535
    %v540 = vpack.c.bf16 %v537, %v536
    %v541 = vpack.c.bf16 %v539, %v538
    %542 = vmatpush.bf16.msra.mxu0 0
    %543 = vmatpush.bf16.msra.mxu0 0
    %544 = vmatpush.bf16.msra.mxu0 0
    %545 = vmatpush.bf16.msra.mxu0 0
    %546 = vmatpush.bf16.msra.mxu0 0
    %547 = vmatpush.bf16.msra.mxu0 0
    %548 = vmatpush.bf16.msra.mxu0 %v541
    %549 = vmatpush.bf16.msra.mxu0 %v540
    %550 = vmatmul.bf16.gmra.mxu0 %v75
    %v551 = vpop.f32.mrf.mxu0
    %v552 = vadd.f32 %v34, %v551
    %v553 = vpop.f32.mrf.mxu0
    %v554 = vadd.f32 %v39, %v553
    %555 = vmatmul.bf16.gmra.mxu0 %v78
    %v556 = vpop.f32.mrf.mxu0
    %v557 = vadd.f32 %v44, %v556
    %v558 = vpop.f32.mrf.mxu0
    %v559 = vadd.f32 %v49, %v558
    %560 = vdwg.mxu0
    %v561 = vtanh.pop %v552
    %v562 = vtanh.pop %v554
    %v563 = vtanh.pop %v557
    %v564 = vtanh.pop %v559
    %v565 = vmul.f32 %v561, 0.02
    %v566 = vmul.f32 %v562, 0.02
    %v567 = vmul.f32 %v563, 0.02
    %v568 = vmul.f32 %v564, 0.02
    %v569 = vadd.f32 %v536, %v565
    %v570 = vadd.f32 %v537, %v566
    %v571 = vadd.f32 %v538, %v567
    %v572 = vadd.f32 %v539, %v568
    %v573 = vpack.c.bf16 %v570, %v569
    %v574 = vpack.c.bf16 %v572, %v571
    %575 = vmatpush.bf16.msra.mxu0 0
    %576 = vmatpush.bf16.msra.mxu0 0
    %577 = vmatpush.bf16.msra.mxu0 0
    %578 = vmatpush.bf16.msra.mxu0 0
    %579 = vmatpush.bf16.msra.mxu0 0
    %580 = vmatpush.bf16.msra.mxu0 0
    %581 = vmatpush.bf16.msra.mxu0 %v574
    %582 = vmatpush.bf16.msra.mxu0 %v573
    %583 = vmatmul.bf16.gmra.mxu0 %v75
    %v584 = vpop.f32.mrf.mxu0
    %v585 = vadd.f32 %v34, %v584
    %v586 = vpop.f32.mrf.mxu0
    %v587 = vadd.f32 %v39, %v586
    %588 = vmatmul.bf16.gmra.mxu0 %v78
    %v589 = vpop.f32.mrf.mxu0
    %v590 = vadd.f32 %v44, %v589
    %v591 = vpop.f32.mrf.mxu0
    %v592 = vadd.f32 %v49, %v591
    %593 = vdwg.mxu0
    %v594 = vtanh.pop %v585
    %v595 = vtanh.pop %v587
    %v596 = vtanh.pop %v590
    %v597 = vtanh.pop %v592
    %v598 = vmul.f32 %v594, 0.02
    %v599 = vmul.f32 %v595, 0.02
    %v600 = vmul.f32 %v596, 0.02
    %v601 = vmul.f32 %v597, 0.02
    %v602 = vadd.f32 %v569, %v598
    %v603 = vadd.f32 %v570, %v599
    %v604 = vadd.f32 %v571, %v600
    %v605 = vadd.f32 %v572, %v601
    %v606 = vpack.c.bf16 %v603, %v602
    %v607 = vpack.c.bf16 %v605, %v604
    %608 = vmatpush.bf16.msra.mxu0 0
    %609 = vmatpush.bf16.msra.mxu0 0
    %610 = vmatpush.bf16.msra.mxu0 0
    %611 = vmatpush.bf16.msra.mxu0 0
    %612 = vmatpush.bf16.msra.mxu0 0
    %613 = vmatpush.bf16.msra.mxu0 0
    %614 = vmatpush.bf16.msra.mxu0 %v607
    %615 = vmatpush.bf16.msra.mxu0 %v606
    %616 = vmatmul.bf16.gmra.mxu0 %v75
    %v617 = vpop.f32.mrf.mxu0
    %v618 = vadd.f32 %v34, %v617
    %v619 = vpop.f32.mrf.mxu0
    %v620 = vadd.f32 %v39, %v619
    %621 = vmatmul.bf16.gmra.mxu0 %v78
    %v622 = vpop.f32.mrf.mxu0
    %v623 = vadd.f32 %v44, %v622
    %v624 = vpop.f32.mrf.mxu0
    %v625 = vadd.f32 %v49, %v624
    %626 = vdwg.mxu0
    %v627 = vtanh.pop %v618
    %v628 = vtanh.pop %v620
    %v629 = vtanh.pop %v623
    %v630 = vtanh.pop %v625
    %v631 = vmul.f32 %v627, 0.02
    %v632 = vmul.f32 %v628, 0.02
    %v633 = vmul.f32 %v629, 0.02
    %v634 = vmul.f32 %v630, 0.02
    %v635 = vadd.f32 %v602, %v631
    %v636 = vadd.f32 %v603, %v632
    %v637 = vadd.f32 %v604, %v633
    %v638 = vadd.f32 %v605, %v634
    %v639 = vpack.c.bf16 %v636, %v635
    %v640 = vpack.c.bf16 %v638, %v637
    %641 = vmatpush.bf16.msra.mxu0 0
    %642 = vmatpush.bf16.msra.mxu0 0
    %643 = vmatpush.bf16.msra.mxu0 0
    %644 = vmatpush.bf16.msra.mxu0 0
    %645 = vmatpush.bf16.msra.mxu0 0
    %646 = vmatpush.bf16.msra.mxu0 0
    %647 = vmatpush.bf16.msra.mxu0 %v640
    %648 = vmatpush.bf16.msra.mxu0 %v639
    %649 = vmatmul.bf16.gmra.mxu0 %v75
    %v650 = vpop.f32.mrf.mxu0
    %v651 = vadd.f32 %v34, %v650
    %v652 = vpop.f32.mrf.mxu0
    %v653 = vadd.f32 %v39, %v652
    %654 = vmatmul.bf16.gmra.mxu0 %v78
    %v655 = vpop.f32.mrf.mxu0
    %v656 = vadd.f32 %v44, %v655
    %v657 = vpop.f32.mrf.mxu0
    %v658 = vadd.f32 %v49, %v657
    %659 = vdwg.mxu0
    %v660 = vtanh.pop %v651
    %v661 = vtanh.pop %v653
    %v662 = vtanh.pop %v656
    %v663 = vtanh.pop %v658
    %v664 = vmul.f32 %v660, 0.02
    %v665 = vmul.f32 %v661, 0.02
    %v666 = vmul.f32 %v662, 0.02
    %v667 = vmul.f32 %v663, 0.02
    %v668 = vadd.f32 %v635, %v664
    %v669 = vadd.f32 %v636, %v665
    %v670 = vadd.f32 %v637, %v666
    %v671 = vadd.f32 %v638, %v667
    %v672 = vpack.c.bf16 %v669, %v668
    %v673 = vpack.c.bf16 %v671, %v670
    %674 = vmatpush.bf16.msra.mxu0 0
    %675 = vmatpush.bf16.msra.mxu0 0
    %676 = vmatpush.bf16.msra.mxu0 0
    %677 = vmatpush.bf16.msra.mxu0 0
    %678 = vmatpush.bf16.msra.mxu0 0
    %679 = vmatpush.bf16.msra.mxu0 0
    %680 = vmatpush.bf16.msra.mxu0 %v673
    %681 = vmatpush.bf16.msra.mxu0 %v672
    %682 = vmatmul.bf16.gmra.mxu0 %v75
    %v683 = vpop.f32.mrf.mxu0
    %v684 = vadd.f32 %v34, %v683
    %v685 = vpop.f32.mrf.mxu0
    %v686 = vadd.f32 %v39, %v685
    %687 = vmatmul.bf16.gmra.mxu0 %v78
    %v688 = vpop.f32.mrf.mxu0
    %v689 = vadd.f32 %v44, %v688
    %v690 = vpop.f32.mrf.mxu0
    %v691 = vadd.f32 %v49, %v690
    %692 = vdwg.mxu0
    %v693 = vtanh.pop %v684
    %v694 = vtanh.pop %v686
    %v695 = vtanh.pop %v689
    %v696 = vtanh.pop %v691
    %v697 = vmul.f32 %v693, 0.02
    %v698 = vmul.f32 %v694, 0.02
    %v699 = vmul.f32 %v695, 0.02
    %v700 = vmul.f32 %v696, 0.02
    %v701 = vadd.f32 %v668, %v697
    %v702 = vadd.f32 %v669, %v698
    %v703 = vadd.f32 %v670, %v699
    %v704 = vadd.f32 %v671, %v700
    %v705 = vpack.c.bf16 %v702, %v701
    %v706 = vpack.c.bf16 %v704, %v703
    %707 = vmatpush.bf16.msra.mxu0 0
    %708 = vmatpush.bf16.msra.mxu0 0
    %709 = vmatpush.bf16.msra.mxu0 0
    %710 = vmatpush.bf16.msra.mxu0 0
    %711 = vmatpush.bf16.msra.mxu0 0
    %712 = vmatpush.bf16.msra.mxu0 0
    %713 = vmatpush.bf16.msra.mxu0 %v706
    %714 = vmatpush.bf16.msra.mxu0 %v705
    %715 = vmatmul.bf16.gmra.mxu0 %v75
    %v716 = vpop.f32.mrf.mxu0
    %v717 = vadd.f32 %v34, %v716
    %v718 = vpop.f32.mrf.mxu0
    %v719 = vadd.f32 %v39, %v718
    %720 = vmatmul.bf16.gmra.mxu0 %v78
    %v721 = vpop.f32.mrf.mxu0
    %v722 = vadd.f32 %v44, %v721
    %v723 = vpop.f32.mrf.mxu0
    %v724 = vadd.f32 %v49, %v723
    %725 = vdwg.mxu0
    %v726 = vtanh.pop %v717
    %v727 = vtanh.pop %v719
    %v728 = vtanh.pop %v722
    %v729 = vtanh.pop %v724
    %v730 = vmul.f32 %v726, 0.02
    %v731 = vmul.f32 %v727, 0.02
    %v732 = vmul.f32 %v728, 0.02
    %v733 = vmul.f32 %v729, 0.02
    %v734 = vadd.f32 %v701, %v730
    %v735 = vadd.f32 %v702, %v731
    %v736 = vadd.f32 %v703, %v732
    %v737 = vadd.f32 %v704, %v733
    %v738 = vpack.c.bf16 %v735, %v734
    %v739 = vpack.c.bf16 %v737, %v736
    %740 = vmatpush.bf16.msra.mxu0 0
    %741 = vmatpush.bf16.msra.mxu0 0
    %742 = vmatpush.bf16.msra.mxu0 0
    %743 = vmatpush.bf16.msra.mxu0 0
    %744 = vmatpush.bf16.msra.mxu0 0
    %745 = vmatpush.bf16.msra.mxu0 0
    %746 = vmatpush.bf16.msra.mxu0 %v739
    %747 = vmatpush.bf16.msra.mxu0 %v738
    %748 = vmatmul.bf16.gmra.mxu0 %v75
    %v749 = vpop.f32.mrf.mxu0
    %v750 = vadd.f32 %v34, %v749
    %v751 = vpop.f32.mrf.mxu0
    %v752 = vadd.f32 %v39, %v751
    %753 = vmatmul.bf16.gmra.mxu0 %v78
    %v754 = vpop.f32.mrf.mxu0
    %v755 = vadd.f32 %v44, %v754
    %v756 = vpop.f32.mrf.mxu0
    %v757 = vadd.f32 %v49, %v756
    %758 = vdwg.mxu0
    %v759 = vtanh.pop %v750
    %v760 = vtanh.pop %v752
    %v761 = vtanh.pop %v755
    %v762 = vtanh.pop %v757
    %v763 = vmul.f32 %v759, 0.02
    %v764 = vmul.f32 %v760, 0.02
    %v765 = vmul.f32 %v761, 0.02
    %v766 = vmul.f32 %v762, 0.02
    %v767 = vadd.f32 %v734, %v763
    %v768 = vadd.f32 %v735, %v764
    %v769 = vadd.f32 %v736, %v765
    %v770 = vadd.f32 %v737, %v766
    %v771 = vpack.c.bf16 %v768, %v767
    %v772 = vpack.c.bf16 %v770, %v769
    %773 = vmatpush.bf16.msra.mxu0 0
    %774 = vmatpush.bf16.msra.mxu0 0
    %775 = vmatpush.bf16.msra.mxu0 0
    %776 = vmatpush.bf16.msra.mxu0 0
    %777 = vmatpush.bf16.msra.mxu0 0
    %778 = vmatpush.bf16.msra.mxu0 0
    %779 = vmatpush.bf16.msra.mxu0 %v772
    %780 = vmatpush.bf16.msra.mxu0 %v771
    %781 = vmatmul.bf16.gmra.mxu0 %v75
    %v782 = vpop.f32.mrf.mxu0
    %v783 = vadd.f32 %v34, %v782
    %v784 = vpop.f32.mrf.mxu0
    %v785 = vadd.f32 %v39, %v784
    %786 = vmatmul.bf16.gmra.mxu0 %v78
    %v787 = vpop.f32.mrf.mxu0
    %v788 = vadd.f32 %v44, %v787
    %v789 = vpop.f32.mrf.mxu0
    %v790 = vadd.f32 %v49, %v789
    %791 = vdwg.mxu0
    %v792 = vtanh.pop %v783
    %v793 = vtanh.pop %v785
    %v794 = vtanh.pop %v788
    %v795 = vtanh.pop %v790
    %v796 = vmul.f32 %v792, 0.02
    %v797 = vmul.f32 %v793, 0.02
    %v798 = vmul.f32 %v794, 0.02
    %v799 = vmul.f32 %v795, 0.02
    %v800 = vadd.f32 %v767, %v796
    %v801 = vadd.f32 %v768, %v797
    %v802 = vadd.f32 %v769, %v798
    %v803 = vadd.f32 %v770, %v799
    %v804 = vpack.c.bf16 %v801, %v800
    %v805 = vpack.c.bf16 %v803, %v802
    %806 = vmatpush.bf16.msra.mxu0 0
    %807 = vmatpush.bf16.msra.mxu0 0
    %808 = vmatpush.bf16.msra.mxu0 0
    %809 = vmatpush.bf16.msra.mxu0 0
    %810 = vmatpush.bf16.msra.mxu0 0
    %811 = vmatpush.bf16.msra.mxu0 0
    %812 = vmatpush.bf16.msra.mxu0 %v805
    %813 = vmatpush.bf16.msra.mxu0 %v804
    %814 = vmatmul.bf16.gmra.mxu0 %v75
    %v815 = vpop.f32.mrf.mxu0
    %v816 = vadd.f32 %v34, %v815
    %v817 = vpop.f32.mrf.mxu0
    %v818 = vadd.f32 %v39, %v817
    %819 = vmatmul.bf16.gmra.mxu0 %v78
    %v820 = vpop.f32.mrf.mxu0
    %v821 = vadd.f32 %v44, %v820
    %v822 = vpop.f32.mrf.mxu0
    %v823 = vadd.f32 %v49, %v822
    %824 = vdwg.mxu0
    %v825 = vtanh.pop %v816
    %v826 = vtanh.pop %v818
    %v827 = vtanh.pop %v821
    %v828 = vtanh.pop %v823
    %v829 = vmul.f32 %v825, 0.02
    %v830 = vmul.f32 %v826, 0.02
    %v831 = vmul.f32 %v827, 0.02
    %v832 = vmul.f32 %v828, 0.02
    %v833 = vadd.f32 %v800, %v829
    %v834 = vadd.f32 %v801, %v830
    %v835 = vadd.f32 %v802, %v831
    %v836 = vadd.f32 %v803, %v832
    %v837 = vpack.c.bf16 %v834, %v833
    %v838 = vpack.c.bf16 %v836, %v835
    %839 = vmatpush.bf16.msra.mxu0 0
    %840 = vmatpush.bf16.msra.mxu0 0
    %841 = vmatpush.bf16.msra.mxu0 0
    %842 = vmatpush.bf16.msra.mxu0 0
    %843 = vmatpush.bf16.msra.mxu0 0
    %844 = vmatpush.bf16.msra.mxu0 0
    %845 = vmatpush.bf16.msra.mxu0 %v838
    %846 = vmatpush.bf16.msra.mxu0 %v837
    %847 = vmatmul.bf16.gmra.mxu0 %v75
    %v848 = vpop.f32.mrf.mxu0
    %v849 = vadd.f32 %v34, %v848
    %v850 = vpop.f32.mrf.mxu0
    %v851 = vadd.f32 %v39, %v850
    %852 = vmatmul.bf16.gmra.mxu0 %v78
    %v853 = vpop.f32.mrf.mxu0
    %v854 = vadd.f32 %v44, %v853
    %v855 = vpop.f32.mrf.mxu0
    %v856 = vadd.f32 %v49, %v855
    %857 = vdwg.mxu0
    %v858 = vtanh.pop %v849
    %v859 = vtanh.pop %v851
    %v860 = vtanh.pop %v854
    %v861 = vtanh.pop %v856
    %v862 = vmul.f32 %v858, 0.02
    %v863 = vmul.f32 %v859, 0.02
    %v864 = vmul.f32 %v860, 0.02
    %v865 = vmul.f32 %v861, 0.02
    %v866 = vadd.f32 %v833, %v862
    %v867 = vadd.f32 %v834, %v863
    %v868 = vadd.f32 %v835, %v864
    %v869 = vadd.f32 %v836, %v865
    %v870 = vpack.c.bf16 %v867, %v866
    %v871 = vpack.c.bf16 %v869, %v868
    %872 = vmatpush.bf16.msra.mxu0 0
    %873 = vmatpush.bf16.msra.mxu0 0
    %874 = vmatpush.bf16.msra.mxu0 0
    %875 = vmatpush.bf16.msra.mxu0 0
    %876 = vmatpush.bf16.msra.mxu0 0
    %877 = vmatpush.bf16.msra.mxu0 0
    %878 = vmatpush.bf16.msra.mxu0 %v871
    %879 = vmatpush.bf16.msra.mxu0 %v870
    %880 = vmatmul.bf16.gmra.mxu0 %v75
    %v881 = vpop.f32.mrf.mxu0
    %v882 = vadd.f32 %v34, %v881
    %v883 = vpop.f32.mrf.mxu0
    %v884 = vadd.f32 %v39, %v883
    %885 = vmatmul.bf16.gmra.mxu0 %v78
    %v886 = vpop.f32.mrf.mxu0
    %v887 = vadd.f32 %v44, %v886
    %v888 = vpop.f32.mrf.mxu0
    %v889 = vadd.f32 %v49, %v888
    %890 = vdwg.mxu0
    %v891 = vtanh.pop %v882
    %v892 = vtanh.pop %v884
    %v893 = vtanh.pop %v887
    %v894 = vtanh.pop %v889
    %v895 = vmul.f32 %v891, 0.02
    %v896 = vmul.f32 %v892, 0.02
    %v897 = vmul.f32 %v893, 0.02
    %v898 = vmul.f32 %v894, 0.02
    %v899 = vadd.f32 %v866, %v895
    %v900 = vadd.f32 %v867, %v896
    %v901 = vadd.f32 %v868, %v897
    %v902 = vadd.f32 %v869, %v898
    %v903 = vpack.c.bf16 %v900, %v899
    %v904 = vpack.c.bf16 %v902, %v901
    %905 = vmatpush.bf16.msra.mxu0 0
    %906 = vmatpush.bf16.msra.mxu0 0
    %907 = vmatpush.bf16.msra.mxu0 0
    %908 = vmatpush.bf16.msra.mxu0 0
    %909 = vmatpush.bf16.msra.mxu0 0
    %910 = vmatpush.bf16.msra.mxu0 0
    %911 = vmatpush.bf16.msra.mxu0 %v904
    %912 = vmatpush.bf16.msra.mxu0 %v903
    %913 = vmatmul.bf16.gmra.mxu0 %v75
    %v914 = vpop.f32.mrf.mxu0
    %v915 = vadd.f32 %v34, %v914
    %v916 = vpop.f32.mrf.mxu0
    %v917 = vadd.f32 %v39, %v916
    %918 = vmatmul.bf16.gmra.mxu0 %v78
    %v919 = vpop.f32.mrf.mxu0
    %v920 = vadd.f32 %v44, %v919
    %v921 = vpop.f32.mrf.mxu0
    %v922 = vadd.f32 %v49, %v921
    %923 = vdwg.mxu0
    %v924 = vtanh.pop %v915
    %v925 = vtanh.pop %v917
    %v926 = vtanh.pop %v920
    %v927 = vtanh.pop %v922
    %v928 = vmul.f32 %v924, 0.02
    %v929 = vmul.f32 %v925, 0.02
    %v930 = vmul.f32 %v926, 0.02
    %v931 = vmul.f32 %v927, 0.02
    %v932 = vadd.f32 %v899, %v928
    %v933 = vadd.f32 %v900, %v929
    %v934 = vadd.f32 %v901, %v930
    %v935 = vadd.f32 %v902, %v931
    %v936 = vpack.c.bf16 %v933, %v932
    %v937 = vpack.c.bf16 %v935, %v934
    %938 = vmatpush.bf16.msra.mxu0 0
    %939 = vmatpush.bf16.msra.mxu0 0
    %940 = vmatpush.bf16.msra.mxu0 0
    %941 = vmatpush.bf16.msra.mxu0 0
    %942 = vmatpush.bf16.msra.mxu0 0
    %943 = vmatpush.bf16.msra.mxu0 0
    %944 = vmatpush.bf16.msra.mxu0 %v937
    %945 = vmatpush.bf16.msra.mxu0 %v936
    %946 = vmatmul.bf16.gmra.mxu0 %v75
    %v947 = vpop.f32.mrf.mxu0
    %v948 = vadd.f32 %v34, %v947
    %v949 = vpop.f32.mrf.mxu0
    %v950 = vadd.f32 %v39, %v949
    %951 = vmatmul.bf16.gmra.mxu0 %v78
    %v952 = vpop.f32.mrf.mxu0
    %v953 = vadd.f32 %v44, %v952
    %v954 = vpop.f32.mrf.mxu0
    %v955 = vadd.f32 %v49, %v954
    %956 = vdwg.mxu0
    %v957 = vtanh.pop %v948
    %v958 = vtanh.pop %v950
    %v959 = vtanh.pop %v953
    %v960 = vtanh.pop %v955
    %v961 = vmul.f32 %v957, 0.02
    %v962 = vmul.f32 %v958, 0.02
    %v963 = vmul.f32 %v959, 0.02
    %v964 = vmul.f32 %v960, 0.02
    %v965 = vadd.f32 %v932, %v961
    %v966 = vadd.f32 %v933, %v962
    %v967 = vadd.f32 %v934, %v963
    %v968 = vadd.f32 %v935, %v964
    %v969 = vpack.c.bf16 %v966, %v965
    %v970 = vpack.c.bf16 %v968, %v967
    %971 = vmatpush.bf16.msra.mxu0 0
    %972 = vmatpush.bf16.msra.mxu0 0
    %973 = vmatpush.bf16.msra.mxu0 0
    %974 = vmatpush.bf16.msra.mxu0 0
    %975 = vmatpush.bf16.msra.mxu0 0
    %976 = vmatpush.bf16.msra.mxu0 0
    %977 = vmatpush.bf16.msra.mxu0 %v970
    %978 = vmatpush.bf16.msra.mxu0 %v969
    %979 = vmatmul.bf16.gmra.mxu0 %v75
    %v980 = vpop.f32.mrf.mxu0
    %v981 = vadd.f32 %v34, %v980
    %v982 = vpop.f32.mrf.mxu0
    %v983 = vadd.f32 %v39, %v982
    %984 = vmatmul.bf16.gmra.mxu0 %v78
    %v985 = vpop.f32.mrf.mxu0
    %v986 = vadd.f32 %v44, %v985
    %v987 = vpop.f32.mrf.mxu0
    %v988 = vadd.f32 %v49, %v987
    %989 = vdwg.mxu0
    %v990 = vtanh.pop %v981
    %v991 = vtanh.pop %v983
    %v992 = vtanh.pop %v986
    %v993 = vtanh.pop %v988
    %v994 = vmul.f32 %v990, 0.02
    %v995 = vmul.f32 %v991, 0.02
    %v996 = vmul.f32 %v992, 0.02
    %v997 = vmul.f32 %v993, 0.02
    %v998 = vadd.f32 %v965, %v994
    %v999 = vadd.f32 %v966, %v995
    %v1000 = vadd.f32 %v967, %v996
    %v1001 = vadd.f32 %v968, %v997
    %v1002 = vpack.c.bf16 %v999, %v998
    %v1003 = vpack.c.bf16 %v1001, %v1000
    %1004 = vmatpush.bf16.msra.mxu0 0
    %1005 = vmatpush.bf16.msra.mxu0 0
    %1006 = vmatpush.bf16.msra.mxu0 0
    %1007 = vmatpush.bf16.msra.mxu0 0
    %1008 = vmatpush.bf16.msra.mxu0 0
    %1009 = vmatpush.bf16.msra.mxu0 0
    %1010 = vmatpush.bf16.msra.mxu0 %v1003
    %1011 = vmatpush.bf16.msra.mxu0 %v1002
    %1012 = vmatmul.bf16.gmra.mxu0 %v75
    %v1013 = vpop.f32.mrf.mxu0
    %v1014 = vadd.f32 %v34, %v1013
    %v1015 = vpop.f32.mrf.mxu0
    %v1016 = vadd.f32 %v39, %v1015
    %1017 = vmatmul.bf16.gmra.mxu0 %v78
    %v1018 = vpop.f32.mrf.mxu0
    %v1019 = vadd.f32 %v44, %v1018
    %v1020 = vpop.f32.mrf.mxu0
    %v1021 = vadd.f32 %v49, %v1020
    %1022 = vdwg.mxu0
    %v1023 = vtanh.pop %v1014
    %v1024 = vtanh.pop %v1016
    %v1025 = vtanh.pop %v1019
    %v1026 = vtanh.pop %v1021
    %v1027 = vmul.f32 %v1023, 0.02
    %v1028 = vmul.f32 %v1024, 0.02
    %v1029 = vmul.f32 %v1025, 0.02
    %v1030 = vmul.f32 %v1026, 0.02
    %v1031 = vadd.f32 %v998, %v1027
    %v1032 = vadd.f32 %v999, %v1028
    %v1033 = vadd.f32 %v1000, %v1029
    %v1034 = vadd.f32 %v1001, %v1030
    %v1035 = vpack.c.bf16 %v1032, %v1031
    %v1036 = vpack.c.bf16 %v1034, %v1033
    %1037 = vmatpush.bf16.msra.mxu0 0
    %1038 = vmatpush.bf16.msra.mxu0 0
    %1039 = vmatpush.bf16.msra.mxu0 0
    %1040 = vmatpush.bf16.msra.mxu0 0
    %1041 = vmatpush.bf16.msra.mxu0 0
    %1042 = vmatpush.bf16.msra.mxu0 0
    %1043 = vmatpush.bf16.msra.mxu0 %v1036
    %1044 = vmatpush.bf16.msra.mxu0 %v1035
    %1045 = vmatmul.bf16.gmra.mxu0 %v75
    %v1046 = vpop.f32.mrf.mxu0
    %v1047 = vadd.f32 %v34, %v1046
    %v1048 = vpop.f32.mrf.mxu0
    %v1049 = vadd.f32 %v39, %v1048
    %1050 = vmatmul.bf16.gmra.mxu0 %v78
    %v1051 = vpop.f32.mrf.mxu0
    %v1052 = vadd.f32 %v44, %v1051
    %v1053 = vpop.f32.mrf.mxu0
    %v1054 = vadd.f32 %v49, %v1053
    %1055 = vdwg.mxu0
    %v1056 = vtanh.pop %v1047
    %v1057 = vtanh.pop %v1049
    %v1058 = vtanh.pop %v1052
    %v1059 = vtanh.pop %v1054
    %v1060 = vmul.f32 %v1056, 0.02
    %v1061 = vmul.f32 %v1057, 0.02
    %v1062 = vmul.f32 %v1058, 0.02
    %v1063 = vmul.f32 %v1059, 0.02
    %v1064 = vadd.f32 %v1031, %v1060
    %v1065 = vadd.f32 %v1032, %v1061
    %v1066 = vadd.f32 %v1033, %v1062
    %v1067 = vadd.f32 %v1034, %v1063
    %v1068 = vpack.c.bf16 %v1065, %v1064
    %v1069 = vpack.c.bf16 %v1067, %v1066
    %1070 = vmatpush.bf16.msra.mxu0 0
    %1071 = vmatpush.bf16.msra.mxu0 0
    %1072 = vmatpush.bf16.msra.mxu0 0
    %1073 = vmatpush.bf16.msra.mxu0 0
    %1074 = vmatpush.bf16.msra.mxu0 0
    %1075 = vmatpush.bf16.msra.mxu0 0
    %1076 = vmatpush.bf16.msra.mxu0 %v1069
    %1077 = vmatpush.bf16.msra.mxu0 %v1068
    %1078 = vmatmul.bf16.gmra.mxu0 %v75
    %v1079 = vpop.f32.mrf.mxu0
    %v1080 = vadd.f32 %v34, %v1079
    %v1081 = vpop.f32.mrf.mxu0
    %v1082 = vadd.f32 %v39, %v1081
    %1083 = vmatmul.bf16.gmra.mxu0 %v78
    %v1084 = vpop.f32.mrf.mxu0
    %v1085 = vadd.f32 %v44, %v1084
    %v1086 = vpop.f32.mrf.mxu0
    %v1087 = vadd.f32 %v49, %v1086
    %1088 = vdwg.mxu0
    %v1089 = vtanh.pop %v1080
    %v1090 = vtanh.pop %v1082
    %v1091 = vtanh.pop %v1085
    %v1092 = vtanh.pop %v1087
    %v1093 = vmul.f32 %v1089, 0.02
    %v1094 = vmul.f32 %v1090, 0.02
    %v1095 = vmul.f32 %v1091, 0.02
    %v1096 = vmul.f32 %v1092, 0.02
    %v1097 = vadd.f32 %v1064, %v1093
    %v1098 = vadd.f32 %v1065, %v1094
    %v1099 = vadd.f32 %v1066, %v1095
    %v1100 = vadd.f32 %v1067, %v1096
    %v1101 = vpack.c.bf16 %v1098, %v1097
    %v1102 = vpack.c.bf16 %v1100, %v1099
    %1103 = vmatpush.bf16.msra.mxu0 0
    %1104 = vmatpush.bf16.msra.mxu0 0
    %1105 = vmatpush.bf16.msra.mxu0 0
    %1106 = vmatpush.bf16.msra.mxu0 0
    %1107 = vmatpush.bf16.msra.mxu0 0
    %1108 = vmatpush.bf16.msra.mxu0 0
    %1109 = vmatpush.bf16.msra.mxu0 %v1102
    %1110 = vmatpush.bf16.msra.mxu0 %v1101
    %1111 = vmatmul.bf16.gmra.mxu0 %v75
    %v1112 = vpop.f32.mrf.mxu0
    %v1113 = vadd.f32 %v34, %v1112
    %v1114 = vpop.f32.mrf.mxu0
    %v1115 = vadd.f32 %v39, %v1114
    %1116 = vmatmul.bf16.gmra.mxu0 %v78
    %v1117 = vpop.f32.mrf.mxu0
    %v1118 = vadd.f32 %v44, %v1117
    %v1119 = vpop.f32.mrf.mxu0
    %v1120 = vadd.f32 %v49, %v1119
    %1121 = vdwg.mxu0
    %v1122 = vtanh.pop %v1113
    %v1123 = vtanh.pop %v1115
    %v1124 = vtanh.pop %v1118
    %v1125 = vtanh.pop %v1120
    %v1126 = vmul.f32 %v1122, 0.02
    %v1127 = vmul.f32 %v1123, 0.02
    %v1128 = vmul.f32 %v1124, 0.02
    %v1129 = vmul.f32 %v1125, 0.02
    %v1130 = vadd.f32 %v1097, %v1126
    %v1131 = vadd.f32 %v1098, %v1127
    %v1132 = vadd.f32 %v1099, %v1128
    %v1133 = vadd.f32 %v1100, %v1129
    %v1134 = vpack.c.bf16 %v1131, %v1130
    %v1135 = vpack.c.bf16 %v1133, %v1132
    %1136 = vmatpush.bf16.msra.mxu0 0
    %1137 = vmatpush.bf16.msra.mxu0 0
    %1138 = vmatpush.bf16.msra.mxu0 0
    %1139 = vmatpush.bf16.msra.mxu0 0
    %1140 = vmatpush.bf16.msra.mxu0 0
    %1141 = vmatpush.bf16.msra.mxu0 0
    %1142 = vmatpush.bf16.msra.mxu0 %v1135
    %1143 = vmatpush.bf16.msra.mxu0 %v1134
    %1144 = vmatmul.bf16.gmra.mxu0 %v75
    %v1145 = vpop.f32.mrf.mxu0
    %v1146 = vadd.f32 %v34, %v1145
    %v1147 = vpop.f32.mrf.mxu0
    %v1148 = vadd.f32 %v39, %v1147
    %1149 = vmatmul.bf16.gmra.mxu0 %v78
    %v1150 = vpop.f32.mrf.mxu0
    %v1151 = vadd.f32 %v44, %v1150
    %v1152 = vpop.f32.mrf.mxu0
    %v1153 = vadd.f32 %v49, %v1152
    %1154 = vdwg.mxu0
    %v1155 = vtanh.pop %v1146
    %v1156 = vtanh.pop %v1148
    %v1157 = vtanh.pop %v1151
    %v1158 = vtanh.pop %v1153
    %v1159 = vmul.f32 %v1155, 0.02
    %v1160 = vmul.f32 %v1156, 0.02
    %v1161 = vmul.f32 %v1157, 0.02
    %v1162 = vmul.f32 %v1158, 0.02
    %v1163 = vadd.f32 %v1130, %v1159
    %v1164 = vadd.f32 %v1131, %v1160
    %v1165 = vadd.f32 %v1132, %v1161
    %v1166 = vadd.f32 %v1133, %v1162
    %v1167 = vpack.c.bf16 %v1164, %v1163
    %v1168 = vpack.c.bf16 %v1166, %v1165
    %1169 = vmatpush.bf16.msra.mxu0 0
    %1170 = vmatpush.bf16.msra.mxu0 0
    %1171 = vmatpush.bf16.msra.mxu0 0
    %1172 = vmatpush.bf16.msra.mxu0 0
    %1173 = vmatpush.bf16.msra.mxu0 0
    %1174 = vmatpush.bf16.msra.mxu0 0
    %1175 = vmatpush.bf16.msra.mxu0 %v1168
    %1176 = vmatpush.bf16.msra.mxu0 %v1167
    %1177 = vmatmul.bf16.gmra.mxu0 %v75
    %v1178 = vpop.f32.mrf.mxu0
    %v1179 = vadd.f32 %v34, %v1178
    %v1180 = vpop.f32.mrf.mxu0
    %v1181 = vadd.f32 %v39, %v1180
    %1182 = vmatmul.bf16.gmra.mxu0 %v78
    %v1183 = vpop.f32.mrf.mxu0
    %v1184 = vadd.f32 %v44, %v1183
    %v1185 = vpop.f32.mrf.mxu0
    %v1186 = vadd.f32 %v49, %v1185
    %1187 = vdwg.mxu0
    %v1188 = vtanh.pop %v1179
    %v1189 = vtanh.pop %v1181
    %v1190 = vtanh.pop %v1184
    %v1191 = vtanh.pop %v1186
    %v1192 = vmul.f32 %v1188, 0.02
    %v1193 = vmul.f32 %v1189, 0.02
    %v1194 = vmul.f32 %v1190, 0.02
    %v1195 = vmul.f32 %v1191, 0.02
    %v1196 = vadd.f32 %v1163, %v1192
    %v1197 = vadd.f32 %v1164, %v1193
    %v1198 = vadd.f32 %v1165, %v1194
    %v1199 = vadd.f32 %v1166, %v1195
    %v1200 = vpack.c.bf16 %v1197, %v1196
    %v1201 = vpack.c.bf16 %v1199, %v1198
    %1202 = vmatpush.bf16.msra.mxu0 0
    %1203 = vmatpush.bf16.msra.mxu0 0
    %1204 = vmatpush.bf16.msra.mxu0 0
    %1205 = vmatpush.bf16.msra.mxu0 0
    %1206 = vmatpush.bf16.msra.mxu0 0
    %1207 = vmatpush.bf16.msra.mxu0 0
    %1208 = vmatpush.bf16.msra.mxu0 %v1201
    %1209 = vmatpush.bf16.msra.mxu0 %v1200
    %1210 = vmatmul.bf16.gmra.mxu0 %v75
    %v1211 = vpop.f32.mrf.mxu0
    %v1212 = vadd.f32 %v34, %v1211
    %v1213 = vpop.f32.mrf.mxu0
    %v1214 = vadd.f32 %v39, %v1213
    %1215 = vmatmul.bf16.gmra.mxu0 %v78
    %v1216 = vpop.f32.mrf.mxu0
    %v1217 = vadd.f32 %v44, %v1216
    %v1218 = vpop.f32.mrf.mxu0
    %v1219 = vadd.f32 %v49, %v1218
    %1220 = vdwg.mxu0
    %v1221 = vtanh.pop %v1212
    %v1222 = vtanh.pop %v1214
    %v1223 = vtanh.pop %v1217
    %v1224 = vtanh.pop %v1219
    %v1225 = vmul.f32 %v1221, 0.02
    %v1226 = vmul.f32 %v1222, 0.02
    %v1227 = vmul.f32 %v1223, 0.02
    %v1228 = vmul.f32 %v1224, 0.02
    %v1229 = vadd.f32 %v1196, %v1225
    %v1230 = vadd.f32 %v1197, %v1226
    %v1231 = vadd.f32 %v1198, %v1227
    %v1232 = vadd.f32 %v1199, %v1228
    %v1233 = vpack.c.bf16 %v1230, %v1229
    %v1234 = vpack.c.bf16 %v1232, %v1231
    %1235 = vmatpush.bf16.msra.mxu0 0
    %1236 = vmatpush.bf16.msra.mxu0 0
    %1237 = vmatpush.bf16.msra.mxu0 0
    %1238 = vmatpush.bf16.msra.mxu0 0
    %1239 = vmatpush.bf16.msra.mxu0 0
    %1240 = vmatpush.bf16.msra.mxu0 0
    %1241 = vmatpush.bf16.msra.mxu0 %v1234
    %1242 = vmatpush.bf16.msra.mxu0 %v1233
    %1243 = vmatmul.bf16.gmra.mxu0 %v75
    %v1244 = vpop.f32.mrf.mxu0
    %v1245 = vadd.f32 %v34, %v1244
    %v1246 = vpop.f32.mrf.mxu0
    %v1247 = vadd.f32 %v39, %v1246
    %1248 = vmatmul.bf16.gmra.mxu0 %v78
    %v1249 = vpop.f32.mrf.mxu0
    %v1250 = vadd.f32 %v44, %v1249
    %v1251 = vpop.f32.mrf.mxu0
    %v1252 = vadd.f32 %v49, %v1251
    %1253 = vdwg.mxu0
    %v1254 = vtanh.pop %v1245
    %v1255 = vtanh.pop %v1247
    %v1256 = vtanh.pop %v1250
    %v1257 = vtanh.pop %v1252
    %v1258 = vmul.f32 %v1254, 0.02
    %v1259 = vmul.f32 %v1255, 0.02
    %v1260 = vmul.f32 %v1256, 0.02
    %v1261 = vmul.f32 %v1257, 0.02
    %v1262 = vadd.f32 %v1229, %v1258
    %v1263 = vadd.f32 %v1230, %v1259
    %v1264 = vadd.f32 %v1231, %v1260
    %v1265 = vadd.f32 %v1232, %v1261
    %v1266 = vpack.c.bf16 %v1263, %v1262
    %v1267 = vpack.c.bf16 %v1265, %v1264
    %1268 = vmatpush.bf16.msra.mxu0 0
    %1269 = vmatpush.bf16.msra.mxu0 0
    %1270 = vmatpush.bf16.msra.mxu0 0
    %1271 = vmatpush.bf16.msra.mxu0 0
    %1272 = vmatpush.bf16.msra.mxu0 0
    %1273 = vmatpush.bf16.msra.mxu0 0
    %1274 = vmatpush.bf16.msra.mxu0 %v1267
    %1275 = vmatpush.bf16.msra.mxu0 %v1266
    %1276 = vmatmul.bf16.gmra.mxu0 %v75
    %v1277 = vpop.f32.mrf.mxu0
    %v1278 = vadd.f32 %v34, %v1277
    %v1279 = vpop.f32.mrf.mxu0
    %v1280 = vadd.f32 %v39, %v1279
    %1281 = vmatmul.bf16.gmra.mxu0 %v78
    %v1282 = vpop.f32.mrf.mxu0
    %v1283 = vadd.f32 %v44, %v1282
    %v1284 = vpop.f32.mrf.mxu0
    %v1285 = vadd.f32 %v49, %v1284
    %1286 = vdwg.mxu0
    %v1287 = vtanh.pop %v1278
    %v1288 = vtanh.pop %v1280
    %v1289 = vtanh.pop %v1283
    %v1290 = vtanh.pop %v1285
    %v1291 = vmul.f32 %v1287, 0.02
    %v1292 = vmul.f32 %v1288, 0.02
    %v1293 = vmul.f32 %v1289, 0.02
    %v1294 = vmul.f32 %v1290, 0.02
    %v1295 = vadd.f32 %v1262, %v1291
    %v1296 = vadd.f32 %v1263, %v1292
    %v1297 = vadd.f32 %v1264, %v1293
    %v1298 = vadd.f32 %v1265, %v1294
    %v1299 = vpack.c.bf16 %v1296, %v1295
    %v1300 = vpack.c.bf16 %v1298, %v1297
    %1301 = vmatpush.bf16.msra.mxu0 0
    %1302 = vmatpush.bf16.msra.mxu0 0
    %1303 = vmatpush.bf16.msra.mxu0 0
    %1304 = vmatpush.bf16.msra.mxu0 0
    %1305 = vmatpush.bf16.msra.mxu0 0
    %1306 = vmatpush.bf16.msra.mxu0 0
    %1307 = vmatpush.bf16.msra.mxu0 %v1300
    %1308 = vmatpush.bf16.msra.mxu0 %v1299
    %1309 = vmatmul.bf16.gmra.mxu0 %v75
    %v1310 = vpop.f32.mrf.mxu0
    %v1311 = vadd.f32 %v34, %v1310
    %v1312 = vpop.f32.mrf.mxu0
    %v1313 = vadd.f32 %v39, %v1312
    %1314 = vmatmul.bf16.gmra.mxu0 %v78
    %v1315 = vpop.f32.mrf.mxu0
    %v1316 = vadd.f32 %v44, %v1315
    %v1317 = vpop.f32.mrf.mxu0
    %v1318 = vadd.f32 %v49, %v1317
    %1319 = vdwg.mxu0
    %v1320 = vtanh.pop %v1311
    %v1321 = vtanh.pop %v1313
    %v1322 = vtanh.pop %v1316
    %v1323 = vtanh.pop %v1318
    %v1324 = vmul.f32 %v1320, 0.02
    %v1325 = vmul.f32 %v1321, 0.02
    %v1326 = vmul.f32 %v1322, 0.02
    %v1327 = vmul.f32 %v1323, 0.02
    %v1328 = vadd.f32 %v1295, %v1324
    %v1329 = vadd.f32 %v1296, %v1325
    %v1330 = vadd.f32 %v1297, %v1326
    %v1331 = vadd.f32 %v1298, %v1327
    %v1332 = vpack.c.bf16 %v1329, %v1328
    %v1333 = vpack.c.bf16 %v1331, %v1330
    %1334 = vmatpush.bf16.msra.mxu0 0
    %1335 = vmatpush.bf16.msra.mxu0 0
    %1336 = vmatpush.bf16.msra.mxu0 0
    %1337 = vmatpush.bf16.msra.mxu0 0
    %1338 = vmatpush.bf16.msra.mxu0 0
    %1339 = vmatpush.bf16.msra.mxu0 0
    %1340 = vmatpush.bf16.msra.mxu0 %v1333
    %1341 = vmatpush.bf16.msra.mxu0 %v1332
    %1342 = vmatmul.bf16.gmra.mxu0 %v75
    %v1343 = vpop.f32.mrf.mxu0
    %v1344 = vadd.f32 %v34, %v1343
    %v1345 = vpop.f32.mrf.mxu0
    %v1346 = vadd.f32 %v39, %v1345
    %1347 = vmatmul.bf16.gmra.mxu0 %v78
    %v1348 = vpop.f32.mrf.mxu0
    %v1349 = vadd.f32 %v44, %v1348
    %v1350 = vpop.f32.mrf.mxu0
    %v1351 = vadd.f32 %v49, %v1350
    %1352 = vdwg.mxu0
    %v1353 = vtanh.pop %v1344
    %v1354 = vtanh.pop %v1346
    %v1355 = vtanh.pop %v1349
    %v1356 = vtanh.pop %v1351
    %v1357 = vmul.f32 %v1353, 0.02
    %v1358 = vmul.f32 %v1354, 0.02
    %v1359 = vmul.f32 %v1355, 0.02
    %v1360 = vmul.f32 %v1356, 0.02
    %v1361 = vadd.f32 %v1328, %v1357
    %v1362 = vadd.f32 %v1329, %v1358
    %v1363 = vadd.f32 %v1330, %v1359
    %v1364 = vadd.f32 %v1331, %v1360
    %v1365 = vpack.c.bf16 %v1362, %v1361
    %v1366 = vpack.c.bf16 %v1364, %v1363
    %1367 = vmatpush.bf16.msra.mxu0 0
    %1368 = vmatpush.bf16.msra.mxu0 0
    %1369 = vmatpush.bf16.msra.mxu0 0
    %1370 = vmatpush.bf16.msra.mxu0 0
    %1371 = vmatpush.bf16.msra.mxu0 0
    %1372 = vmatpush.bf16.msra.mxu0 0
    %1373 = vmatpush.bf16.msra.mxu0 %v1366
    %1374 = vmatpush.bf16.msra.mxu0 %v1365
    %1375 = vmatmul.bf16.gmra.mxu0 %v75
    %v1376 = vpop.f32.mrf.mxu0
    %v1377 = vadd.f32 %v34, %v1376
    %v1378 = vpop.f32.mrf.mxu0
    %v1379 = vadd.f32 %v39, %v1378
    %1380 = vmatmul.bf16.gmra.mxu0 %v78
    %v1381 = vpop.f32.mrf.mxu0
    %v1382 = vadd.f32 %v44, %v1381
    %v1383 = vpop.f32.mrf.mxu0
    %v1384 = vadd.f32 %v49, %v1383
    %1385 = vdwg.mxu0
    %v1386 = vtanh.pop %v1377
    %v1387 = vtanh.pop %v1379
    %v1388 = vtanh.pop %v1382
    %v1389 = vtanh.pop %v1384
    %v1390 = vmul.f32 %v1386, 0.02
    %v1391 = vmul.f32 %v1387, 0.02
    %v1392 = vmul.f32 %v1388, 0.02
    %v1393 = vmul.f32 %v1389, 0.02
    %v1394 = vadd.f32 %v1361, %v1390
    %v1395 = vadd.f32 %v1362, %v1391
    %v1396 = vadd.f32 %v1363, %v1392
    %v1397 = vadd.f32 %v1364, %v1393
    %v1398 = vpack.c.bf16 %v1395, %v1394
    %v1399 = vpack.c.bf16 %v1397, %v1396
    %1400 = vmatpush.bf16.msra.mxu0 0
    %1401 = vmatpush.bf16.msra.mxu0 0
    %1402 = vmatpush.bf16.msra.mxu0 0
    %1403 = vmatpush.bf16.msra.mxu0 0
    %1404 = vmatpush.bf16.msra.mxu0 0
    %1405 = vmatpush.bf16.msra.mxu0 0
    %1406 = vmatpush.bf16.msra.mxu0 %v1399
    %1407 = vmatpush.bf16.msra.mxu0 %v1398
    %1408 = vmatmul.bf16.gmra.mxu0 %v75
    %v1409 = vpop.f32.mrf.mxu0
    %v1410 = vadd.f32 %v34, %v1409
    %v1411 = vpop.f32.mrf.mxu0
    %v1412 = vadd.f32 %v39, %v1411
    %1413 = vmatmul.bf16.gmra.mxu0 %v78
    %v1414 = vpop.f32.mrf.mxu0
    %v1415 = vadd.f32 %v44, %v1414
    %v1416 = vpop.f32.mrf.mxu0
    %v1417 = vadd.f32 %v49, %v1416
    %1418 = vdwg.mxu0
    %v1419 = vtanh.pop %v1410
    %v1420 = vtanh.pop %v1412
    %v1421 = vtanh.pop %v1415
    %v1422 = vtanh.pop %v1417
    %v1423 = vmul.f32 %v1419, 0.02
    %v1424 = vmul.f32 %v1420, 0.02
    %v1425 = vmul.f32 %v1421, 0.02
    %v1426 = vmul.f32 %v1422, 0.02
    %v1427 = vadd.f32 %v1394, %v1423
    %v1428 = vadd.f32 %v1395, %v1424
    %v1429 = vadd.f32 %v1396, %v1425
    %v1430 = vadd.f32 %v1397, %v1426
    %v1431 = vpack.c.bf16 %v1428, %v1427
    %v1432 = vpack.c.bf16 %v1430, %v1429
    %1433 = vmatpush.bf16.msra.mxu0 0
    %1434 = vmatpush.bf16.msra.mxu0 0
    %1435 = vmatpush.bf16.msra.mxu0 0
    %1436 = vmatpush.bf16.msra.mxu0 0
    %1437 = vmatpush.bf16.msra.mxu0 0
    %1438 = vmatpush.bf16.msra.mxu0 0
    %1439 = vmatpush.bf16.msra.mxu0 %v1432
    %1440 = vmatpush.bf16.msra.mxu0 %v1431
    %1441 = vmatmul.bf16.gmra.mxu0 %v75
    %v1442 = vpop.f32.mrf.mxu0
    %v1443 = vadd.f32 %v34, %v1442
    %v1444 = vpop.f32.mrf.mxu0
    %v1445 = vadd.f32 %v39, %v1444
    %1446 = vmatmul.bf16.gmra.mxu0 %v78
    %v1447 = vpop.f32.mrf.mxu0
    %v1448 = vadd.f32 %v44, %v1447
    %v1449 = vpop.f32.mrf.mxu0
    %v1450 = vadd.f32 %v49, %v1449
    %1451 = vdwg.mxu0
    %v1452 = vtanh.pop %v1443
    %v1453 = vtanh.pop %v1445
    %v1454 = vtanh.pop %v1448
    %v1455 = vtanh.pop %v1450
    %v1456 = vmul.f32 %v1452, 0.02
    %v1457 = vmul.f32 %v1453, 0.02
    %v1458 = vmul.f32 %v1454, 0.02
    %v1459 = vmul.f32 %v1455, 0.02
    %v1460 = vadd.f32 %v1427, %v1456
    %v1461 = vadd.f32 %v1428, %v1457
    %v1462 = vadd.f32 %v1429, %v1458
    %v1463 = vadd.f32 %v1430, %v1459
    %v1464 = vpack.c.bf16 %v1461, %v1460
    %v1465 = vpack.c.bf16 %v1463, %v1462
    %1466 = vmatpush.bf16.msra.mxu0 0
    %1467 = vmatpush.bf16.msra.mxu0 0
    %1468 = vmatpush.bf16.msra.mxu0 0
    %1469 = vmatpush.bf16.msra.mxu0 0
    %1470 = vmatpush.bf16.msra.mxu0 0
    %1471 = vmatpush.bf16.msra.mxu0 0
    %1472 = vmatpush.bf16.msra.mxu0 %v1465
    %1473 = vmatpush.bf16.msra.mxu0 %v1464
    %1474 = vmatmul.bf16.gmra.mxu0 %v75
    %v1475 = vpop.f32.mrf.mxu0
    %v1476 = vadd.f32 %v34, %v1475
    %v1477 = vpop.f32.mrf.mxu0
    %v1478 = vadd.f32 %v39, %v1477
    %1479 = vmatmul.bf16.gmra.mxu0 %v78
    %v1480 = vpop.f32.mrf.mxu0
    %v1481 = vadd.f32 %v44, %v1480
    %v1482 = vpop.f32.mrf.mxu0
    %v1483 = vadd.f32 %v49, %v1482
    %1484 = vdwg.mxu0
    %v1485 = vtanh.pop %v1476
    %v1486 = vtanh.pop %v1478
    %v1487 = vtanh.pop %v1481
    %v1488 = vtanh.pop %v1483
    %v1489 = vmul.f32 %v1485, 0.02
    %v1490 = vmul.f32 %v1486, 0.02
    %v1491 = vmul.f32 %v1487, 0.02
    %v1492 = vmul.f32 %v1488, 0.02
    %v1493 = vadd.f32 %v1460, %v1489
    %v1494 = vadd.f32 %v1461, %v1490
    %v1495 = vadd.f32 %v1462, %v1491
    %v1496 = vadd.f32 %v1463, %v1492
    %v1497 = vpack.c.bf16 %v1494, %v1493
    %v1498 = vpack.c.bf16 %v1496, %v1495
    %1499 = vmatpush.bf16.msra.mxu0 0
    %1500 = vmatpush.bf16.msra.mxu0 0
    %1501 = vmatpush.bf16.msra.mxu0 0
    %1502 = vmatpush.bf16.msra.mxu0 0
    %1503 = vmatpush.bf16.msra.mxu0 0
    %1504 = vmatpush.bf16.msra.mxu0 0
    %1505 = vmatpush.bf16.msra.mxu0 %v1498
    %1506 = vmatpush.bf16.msra.mxu0 %v1497
    %1507 = vmatmul.bf16.gmra.mxu0 %v75
    %v1508 = vpop.f32.mrf.mxu0
    %v1509 = vadd.f32 %v34, %v1508
    %v1510 = vpop.f32.mrf.mxu0
    %v1511 = vadd.f32 %v39, %v1510
    %1512 = vmatmul.bf16.gmra.mxu0 %v78
    %v1513 = vpop.f32.mrf.mxu0
    %v1514 = vadd.f32 %v44, %v1513
    %v1515 = vpop.f32.mrf.mxu0
    %v1516 = vadd.f32 %v49, %v1515
    %1517 = vdwg.mxu0
    %v1518 = vtanh.pop %v1509
    %v1519 = vtanh.pop %v1511
    %v1520 = vtanh.pop %v1514
    %v1521 = vtanh.pop %v1516
    %v1522 = vmul.f32 %v1518, 0.02
    %v1523 = vmul.f32 %v1519, 0.02
    %v1524 = vmul.f32 %v1520, 0.02
    %v1525 = vmul.f32 %v1521, 0.02
    %v1526 = vadd.f32 %v1493, %v1522
    %v1527 = vadd.f32 %v1494, %v1523
    %v1528 = vadd.f32 %v1495, %v1524
    %v1529 = vadd.f32 %v1496, %v1525
    %v1530 = vpack.c.bf16 %v1527, %v1526
    %v1531 = vpack.c.bf16 %v1529, %v1528
    %1532 = vmatpush.bf16.msra.mxu0 0
    %1533 = vmatpush.bf16.msra.mxu0 0
    %1534 = vmatpush.bf16.msra.mxu0 0
    %1535 = vmatpush.bf16.msra.mxu0 0
    %1536 = vmatpush.bf16.msra.mxu0 0
    %1537 = vmatpush.bf16.msra.mxu0 0
    %1538 = vmatpush.bf16.msra.mxu0 %v1531
    %1539 = vmatpush.bf16.msra.mxu0 %v1530
    %1540 = vmatmul.bf16.gmra.mxu0 %v75
    %v1541 = vpop.f32.mrf.mxu0
    %v1542 = vadd.f32 %v34, %v1541
    %v1543 = vpop.f32.mrf.mxu0
    %v1544 = vadd.f32 %v39, %v1543
    %1545 = vmatmul.bf16.gmra.mxu0 %v78
    %v1546 = vpop.f32.mrf.mxu0
    %v1547 = vadd.f32 %v44, %v1546
    %v1548 = vpop.f32.mrf.mxu0
    %v1549 = vadd.f32 %v49, %v1548
    %1550 = vdwg.mxu0
    %v1551 = vtanh.pop %v1542
    %v1552 = vtanh.pop %v1544
    %v1553 = vtanh.pop %v1547
    %v1554 = vtanh.pop %v1549
    %v1555 = vmul.f32 %v1551, 0.02
    %v1556 = vmul.f32 %v1552, 0.02
    %v1557 = vmul.f32 %v1553, 0.02
    %v1558 = vmul.f32 %v1554, 0.02
    %v1559 = vadd.f32 %v1526, %v1555
    %v1560 = vadd.f32 %v1527, %v1556
    %v1561 = vadd.f32 %v1528, %v1557
    %v1562 = vadd.f32 %v1529, %v1558
    %v1563 = vpack.c.bf16 %v1560, %v1559
    %v1564 = vpack.c.bf16 %v1562, %v1561
    %1565 = vmatpush.bf16.msra.mxu0 0
    %1566 = vmatpush.bf16.msra.mxu0 0
    %1567 = vmatpush.bf16.msra.mxu0 0
    %1568 = vmatpush.bf16.msra.mxu0 0
    %1569 = vmatpush.bf16.msra.mxu0 0
    %1570 = vmatpush.bf16.msra.mxu0 0
    %1571 = vmatpush.bf16.msra.mxu0 %v1564
    %1572 = vmatpush.bf16.msra.mxu0 %v1563
    %1573 = vmatmul.bf16.gmra.mxu0 %v75
    %v1574 = vpop.f32.mrf.mxu0
    %v1575 = vadd.f32 %v34, %v1574
    %v1576 = vpop.f32.mrf.mxu0
    %v1577 = vadd.f32 %v39, %v1576
    %1578 = vmatmul.bf16.gmra.mxu0 %v78
    %v1579 = vpop.f32.mrf.mxu0
    %v1580 = vadd.f32 %v44, %v1579
    %v1581 = vpop.f32.mrf.mxu0
    %v1582 = vadd.f32 %v49, %v1581
    %1583 = vdwg.mxu0
    %v1584 = vtanh.pop %v1575
    %v1585 = vtanh.pop %v1577
    %v1586 = vtanh.pop %v1580
    %v1587 = vtanh.pop %v1582
    %v1588 = vmul.f32 %v1584, 0.02
    %v1589 = vmul.f32 %v1585, 0.02
    %v1590 = vmul.f32 %v1586, 0.02
    %v1591 = vmul.f32 %v1587, 0.02
    %v1592 = vadd.f32 %v1559, %v1588
    %v1593 = vadd.f32 %v1560, %v1589
    %v1594 = vadd.f32 %v1561, %v1590
    %v1595 = vadd.f32 %v1562, %v1591
    %v1596 = vpack.c.bf16 %v1593, %v1592
    %v1597 = vpack.c.bf16 %v1595, %v1594
    %1598 = vmatpush.bf16.msra.mxu0 0
    %1599 = vmatpush.bf16.msra.mxu0 0
    %1600 = vmatpush.bf16.msra.mxu0 0
    %1601 = vmatpush.bf16.msra.mxu0 0
    %1602 = vmatpush.bf16.msra.mxu0 0
    %1603 = vmatpush.bf16.msra.mxu0 0
    %1604 = vmatpush.bf16.msra.mxu0 %v1597
    %1605 = vmatpush.bf16.msra.mxu0 %v1596
    %1606 = vmatmul.bf16.gmra.mxu0 %v75
    %v1607 = vpop.f32.mrf.mxu0
    %v1608 = vadd.f32 %v34, %v1607
    %v1609 = vpop.f32.mrf.mxu0
    %v1610 = vadd.f32 %v39, %v1609
    %1611 = vmatmul.bf16.gmra.mxu0 %v78
    %v1612 = vpop.f32.mrf.mxu0
    %v1613 = vadd.f32 %v44, %v1612
    %v1614 = vpop.f32.mrf.mxu0
    %v1615 = vadd.f32 %v49, %v1614
    %1616 = vdwg.mxu0
    %v1617 = vtanh.pop %v1608
    %v1618 = vtanh.pop %v1610
    %v1619 = vtanh.pop %v1613
    %v1620 = vtanh.pop %v1615
    %v1621 = vmul.f32 %v1617, 0.02
    %v1622 = vmul.f32 %v1618, 0.02
    %v1623 = vmul.f32 %v1619, 0.02
    %v1624 = vmul.f32 %v1620, 0.02
    %v1625 = vadd.f32 %v1592, %v1621
    %v1626 = vadd.f32 %v1593, %v1622
    %v1627 = vadd.f32 %v1594, %v1623
    %v1628 = vadd.f32 %v1595, %v1624
    %v1629 = vpack.c.bf16 %v1626, %v1625
    %v1630 = vpack.c.bf16 %v1628, %v1627
    %1631 = vmatpush.bf16.msra.mxu0 0
    %1632 = vmatpush.bf16.msra.mxu0 0
    %1633 = vmatpush.bf16.msra.mxu0 0
    %1634 = vmatpush.bf16.msra.mxu0 0
    %1635 = vmatpush.bf16.msra.mxu0 0
    %1636 = vmatpush.bf16.msra.mxu0 0
    %1637 = vmatpush.bf16.msra.mxu0 %v1630
    %1638 = vmatpush.bf16.msra.mxu0 %v1629
    %1639 = vmatmul.bf16.gmra.mxu0 %v75
    %v1640 = vpop.f32.mrf.mxu0
    %v1641 = vadd.f32 %v34, %v1640
    %v1642 = vpop.f32.mrf.mxu0
    %v1643 = vadd.f32 %v39, %v1642
    %1644 = vmatmul.bf16.gmra.mxu0 %v78
    %v1645 = vpop.f32.mrf.mxu0
    %v1646 = vadd.f32 %v44, %v1645
    %v1647 = vpop.f32.mrf.mxu0
    %v1648 = vadd.f32 %v49, %v1647
    %1649 = vdwg.mxu0
    %v1650 = vtanh.pop %v1641
    %v1651 = vtanh.pop %v1643
    %v1652 = vtanh.pop %v1646
    %v1653 = vtanh.pop %v1648
    %v1654 = vmul.f32 %v1650, 0.02
    %v1655 = vmul.f32 %v1651, 0.02
    %v1656 = vmul.f32 %v1652, 0.02
    %v1657 = vmul.f32 %v1653, 0.02
    %v1658 = vadd.f32 %v1625, %v1654
    %v1659 = vadd.f32 %v1626, %v1655
    %v1660 = vadd.f32 %v1627, %v1656
    %v1661 = vadd.f32 %v1628, %v1657
    %v1662 = vpack.c.bf16 %v1659, %v1658
    %v1663 = vpack.c.bf16 %v1661, %v1660
    %1664 = vmatpush.bf16.msra.mxu0 0
    %1665 = vmatpush.bf16.msra.mxu0 0
    %1666 = vmatpush.bf16.msra.mxu0 0
    %1667 = vmatpush.bf16.msra.mxu0 0
    %1668 = vmatpush.bf16.msra.mxu0 0
    %1669 = vmatpush.bf16.msra.mxu0 0
    %1670 = vmatpush.bf16.msra.mxu0 %v1663
    %1671 = vmatpush.bf16.msra.mxu0 %v1662
    %1672 = vmatmul.bf16.gmra.mxu0 %v75
    %v1673 = vpop.f32.mrf.mxu0
    %v1674 = vadd.f32 %v34, %v1673
    %v1675 = vpop.f32.mrf.mxu0
    %v1676 = vadd.f32 %v39, %v1675
    %1677 = vmatmul.bf16.gmra.mxu0 %v78
    %v1678 = vpop.f32.mrf.mxu0
    %v1679 = vadd.f32 %v44, %v1678
    %v1680 = vpop.f32.mrf.mxu0
    %v1681 = vadd.f32 %v49, %v1680
    %1682 = vdwg.mxu0
    %v1683 = vtanh.pop %v1674
    %v1684 = vtanh.pop %v1676
    %v1685 = vtanh.pop %v1679
    %v1686 = vtanh.pop %v1681
    %v1687 = vmul.f32 %v1683, 0.02
    %v1688 = vmul.f32 %v1684, 0.02
    %v1689 = vmul.f32 %v1685, 0.02
    %v1690 = vmul.f32 %v1686, 0.02
    %v1691 = vadd.f32 %v1658, %v1687
    %v1692 = vadd.f32 %v1659, %v1688
    %v1693 = vadd.f32 %v1660, %v1689
    %v1694 = vadd.f32 %v1661, %v1690
    %v1695 = vpack.c.bf16 %v1692, %v1691
    %v1696 = vpack.c.bf16 %v1694, %v1693
    %1697 = vmatpush.bf16.msra.mxu0 0
    %1698 = vmatpush.bf16.msra.mxu0 0
    %1699 = vmatpush.bf16.msra.mxu0 0
    %1700 = vmatpush.bf16.msra.mxu0 0
    %1701 = vmatpush.bf16.msra.mxu0 0
    %1702 = vmatpush.bf16.msra.mxu0 0
    %1703 = vmatpush.bf16.msra.mxu0 %v1696
    %1704 = vmatpush.bf16.msra.mxu0 %v1695
    %1705 = vmatmul.bf16.gmra.mxu0 %v75
    %v1706 = vpop.f32.mrf.mxu0
    %v1707 = vadd.f32 %v34, %v1706
    %v1708 = vpop.f32.mrf.mxu0
    %v1709 = vadd.f32 %v39, %v1708
    %1710 = vmatmul.bf16.gmra.mxu0 %v78
    %v1711 = vpop.f32.mrf.mxu0
    %v1712 = vadd.f32 %v44, %v1711
    %v1713 = vpop.f32.mrf.mxu0
    %v1714 = vadd.f32 %v49, %v1713
    %1715 = vdwg.mxu0
    %v1716 = vtanh.pop %v1707
    %v1717 = vtanh.pop %v1709
    %v1718 = vtanh.pop %v1712
    %v1719 = vtanh.pop %v1714
    %v1720 = vmul.f32 %v1716, 0.02
    %v1721 = vmul.f32 %v1717, 0.02
    %v1722 = vmul.f32 %v1718, 0.02
    %v1723 = vmul.f32 %v1719, 0.02
    %v1724 = vadd.f32 %v1691, %v1720
    %v1725 = vadd.f32 %v1692, %v1721
    %v1726 = vadd.f32 %v1693, %v1722
    %v1727 = vadd.f32 %v1694, %v1723
    %v1728 = vpack.c.bf16 %v1725, %v1724
    %v1729 = vpack.c.bf16 %v1727, %v1726
    %v1731 = vsel %vm73, %v26, 0
    %1733 = vmatpush.bf16.msra.mxu0 0
    %1734 = vmatpush.bf16.msra.mxu0 0
    %1735 = vmatpush.bf16.msra.mxu0 0
    %1736 = vmatpush.bf16.msra.mxu0 0
    %1737 = vmatpush.bf16.msra.mxu0 0
    %1738 = vmatpush.bf16.msra.mxu0 0
    %1739 = vmatpush.bf16.msra.mxu0 %v1729
    %1740 = vmatpush.bf16.msra.mxu0 %v1728
    %1741 = vmatmul.bf16.gmra.mxu0 %v1731
    %v1742 = vpop.f32.mrf.mxu0
    %v1743 = vadd.f32 %v55, %v1742
    %v1744 = vpop.f32.mrf.mxu0
    %1745 = vdwg.mxu0
    %vm1746 = vcmask 64512
    %v1747 = vsel %vm1746, %v1743, -inf
    %v1748 = vrot.slane %v1747, 4
    %v1749 = vmax.f32 %v1747, %v1748
    %v1750 = vrot.slane %v1749, 2
    %v1751 = vmax.f32 %v1749, %v1750
    %v1752 = vrot.slane %v1751, 1
    %v1753 = vmax.f32 %v1751, %v1752
    %v1754 = vsub.f32 %v1743, %v1753
    %v1755 = vmul.f32 %v1754, 1.442695
    %v1756 = vpow.pop %v1755
    %v1757 = vsel %vm1746, %v1756, 0.0
    %v1758 = vrot.slane %v1757, 4
    %v1759 = vadd.f32 %v1757, %v1758
    %v1760 = vrot.slane %v1759, 2
    %v1761 = vadd.f32 %v1759, %v1760
    %v1762 = vrot.slane %v1761, 1
    %v1763 = vadd.f32 %v1761, %v1762
    %v1764 = vlog2.pop %v1763
    %v1765 = vmul.f32 %v1764, 0.6931472
    %v1766 = vsub.f32 %v1754, %v1765
    %1767 = vst.msk [vmem:[#allocation2] sm:$0xff] %vm1746, %v1766
    // Predicated region
    $region22: #{tpu_custom_call.1} parent=1 // pred_check
      _
    $region23: #{tpu_custom_call.1} parent=1 // pred_check_branch
      %1769 = sbr.rel (0) target = $region25
    $region24: #{tpu_custom_call.1} parent=1 // pred_region
      %1771 = vsyncadd [#allocation3], 0
      %s1773 = sshll.u32 [#allocation2], 4
      %s1774 = int_to_ptr.vmem [resolvable:$true] %s1773
      %s1775 = sshll.u32 %s5, 4
      %s1776 = int_to_ptr.hbm [resolvable:$true] %s1775
      %1778 = dma.vmem_to_hbm [thread:$0]  %s1774, 128, %s1776, [#allocation3]
    $region25: #{tpu_custom_call.1} parent=1 // pred_fallthru
      _
    // Predicated region
    $region26: #{tpu_custom_call.1} parent=1 // pred_check
      _
    $region27: #{tpu_custom_call.1} parent=1 // pred_check_branch
      %1780 = sbr.rel (0) target = $region29
    $region28: #{tpu_custom_call.1} parent=1 // pred_region
      %1782 = dma.done [#allocation3], 128
    $region29: #{tpu_custom_call.1} parent=1 // pred_fallthru
      _
    %1783 = vsyncpa [#allocation3], 1

</llo_original>
